<compile_context>
chip_gen: v6e
topology: v6e:2x2x1
jax: 0.10.0
libtpu: 0.0.40
codegen_flags: <defaults>
</compile_context>

<pallas_src>
import jax
import jax.numpy as jnp
from jax.experimental import pallas as pl
from jax.experimental.pallas import tpu as pltpu

D_INPUT = 28 * 28            # 784
D_NOISE = 128
N_CLASSES = 10
D_IN = D_NOISE + N_CLASSES   # 138
D_HIDDEN = 512


def _round_up(x, m):
    return (x + m - 1) // m * m


def _cdiv(a, b):
    return -(-a // b)


def _choose_tiling(B):
    """Pick (tile_rows, padded_batch).

    - 16-aligned tiles (bf16 sublane packing).
    - >= 2 grid steps whenever the batch is big enough, so the "parallel"
      batch axis can shard across both TensorCores on v7x.
    - Tiles capped at 1024 rows and balanced across steps so last-tile padding
      waste stays small.
    """
    bp = _round_up(B, 16)
    if bp <= 32:
        return bp, bp                      # tiny demo batch: single tile
    n_tiles = max(2, _cdiv(bp, 1024))
    tb = _round_up(_cdiv(bp, n_tiles), 16)
    return tb, n_tiles * tb


def generator_kernel(x_ref, w1_ref, b1_ref, w2_ref, b2_ref, o_ref):
    """One batch tile: (x @ W1 + b1) -> LeakyReLU(0.2) -> (@ W2 + b2) -> Tanh.

    x / W1 / W2 are bf16 (MXU fast path); accumulation and activations are f32;
    the store casts to the bf16 output dtype.
    """
    x = x_ref[...]                                                    # (TB, 138) bf16
    h = jnp.dot(x, w1_ref[...], preferred_element_type=jnp.float32)  # (TB, 512) f32
    h = h + b1_ref[...]                                               # (1, 512) f32 broadcast
    h = jnp.where(h > 0, h, 0.2 * h)                                  # LeakyReLU(0.2), f32
    y = jnp.dot(h.astype(jnp.bfloat16), w2_ref[...],
                preferred_element_type=jnp.float32)                   # (TB, 784) f32
    y = y + b2_ref[...]                                               # (1, 784) f32 broadcast
    o_ref[...] = jnp.tanh(y).astype(o_ref.dtype)                      # bf16 store


@jax.jit
def generator_forward(x, w1_bf, b1, w2_bf, b2):
    """x: (B, 138) f32. w1_bf/w2_bf: bf16 [in, out]. b1/b2: f32 (1, out).

    Returns (B, 784) bf16 (tanh output; bf16 quantization ~4e-3 abs error).
    """
    B = x.shape[0]
    tb, bp = _choose_tiling(B)

    x_bf = x.astype(jnp.bfloat16)
    if bp != B:
        x_bf = jnp.pad(x_bf, ((0, bp - B), (0, 0)))

    grid = (bp // tb,)
    flops = 2 * bp * (D_IN * D_HIDDEN + D_HIDDEN * D_INPUT)
    bytes_accessed = (bp * D_IN * 2                 # x (bf16)
                      + D_IN * D_HIDDEN * 2         # W1 (bf16, resident)
                      + D_HIDDEN * D_INPUT * 2      # W2 (bf16, resident)
                      + D_HIDDEN * 4 + D_INPUT * 4  # biases (f32)
                      + bp * D_INPUT * 2)           # out (bf16)

    out = pl.pallas_call(
        generator_kernel,
        out_shape=jax.ShapeDtypeStruct((bp, D_INPUT), jnp.bfloat16),
        grid=grid,
        in_specs=[
            pl.BlockSpec((tb, D_IN), lambda i: (i, 0)),            # x: per-tile stream
            pl.BlockSpec((D_IN, D_HIDDEN), lambda i: (0, 0)),      # W1: resident
            pl.BlockSpec((1, D_HIDDEN), lambda i: (0, 0)),         # b1: resident
            pl.BlockSpec((D_HIDDEN, D_INPUT), lambda i: (0, 0)),   # W2: resident
            pl.BlockSpec((1, D_INPUT), lambda i: (0, 0)),          # b2: resident
        ],
        out_specs=pl.BlockSpec((tb, D_INPUT), lambda i: (i, 0)),
        compiler_params=pltpu.CompilerParams(
            dimension_semantics=("parallel",),   # batch tiles shard across TCs (v7x)
        ),
        cost_estimate=pl.CostEstimate(
            flops=flops,
            transcendentals=bp * D_INPUT,        # tanh
            bytes_accessed=bytes_accessed,
        ),
    )(x_bf, w1_bf, b1, w2_bf, b2)

    if bp != B:
        out = out[:B]
    return out


def init_params(key):
    """Deterministic f32 init mimicking PyTorch nn.Linear default U(-1/sqrt(fan_in), +)."""
    k1, k2, k3, k4 = jax.random.split(key, 4)
    bound1 = 1.0 / jnp.sqrt(jnp.float32(D_IN))
    bound2 = 1.0 / jnp.sqrt(jnp.float32(D_HIDDEN))
    # Stored as [in, out] (transpose of PyTorch's [out, in]) so kernel does x @ W.
    w1 = jax.random.uniform(k1, (D_IN, D_HIDDEN), jnp.float32, -bound1, bound1)
    b1 = jax.random.uniform(k2, (1, D_HIDDEN), jnp.float32, -bound1, bound1)
    w2 = jax.random.uniform(k3, (D_HIDDEN, D_INPUT), jnp.float32, -bound2, bound2)
    b2 = jax.random.uniform(k4, (1, D_INPUT), jnp.float32, -bound2, bound2)
    return w1, b1, w2, b2


def prepare_params(w1, b1, w2, b2):
    """One-time weight prep (hoisted out of the per-call path): weights -> bf16."""
    return w1.astype(jnp.bfloat16), b1, w2.astype(jnp.bfloat16), b2


def reference_forward(x, w1, b1, w2, b2):
    h = x @ w1 + b1
    h = jnp.where(h > 0, h, 0.2 * h)
    y = h @ w2 + b2
    return jnp.tanh(y)


def _make_input(key, batch):
    noise = jax.random.normal(key, (batch, D_NOISE), jnp.float32)
    labels = jnp.arange(batch) % N_CLASSES
    onehot = jax.nn.one_hot(labels, N_CLASSES, dtype=jnp.float32)
    return jnp.concatenate([noise, onehot], axis=-1)   # (batch, 138)


if __name__ == "__main__":
    key = jax.random.PRNGKey(0)
    k_params, k_x1, k_x2 = jax.random.split(key, 3)
    w1, b1, w2, b2 = init_params(k_params)
    w1_bf, b1_p, w2_bf, b2_p = prepare_params(w1, b1, w2, b2)   # once, outside the hot path

    # Small batch (single-tile path).
    x_small = _make_input(k_x1, 8)
    out_small = jax.block_until_ready(generator_forward(x_small, w1_bf, b1_p, w2_bf, b2_p))
    ref_small = reference_forward(x_small, w1, b1, w2, b2)
    assert out_small.shape == (8, D_INPUT)
    assert jnp.allclose(out_small.astype(jnp.float32), ref_small, atol=2e-2, rtol=2e-2), \
        float(jnp.max(jnp.abs(out_small.astype(jnp.float32) - ref_small)))

    # Larger, non-multiple batch (exercises 2-tile grid + pad/slice path: 2 x 152 rows).
    x_big = _make_input(k_x2, 300)
    out_big = jax.block_until_ready(generator_forward(x_big, w1_bf, b1_p, w2_bf, b2_p))
    ref_big = reference_forward(x_big, w1, b1, w2, b2)
    assert out_big.shape == (300, D_INPUT)
    assert jnp.allclose(out_big.astype(jnp.float32), ref_big, atol=2e-2, rtol=2e-2), \
        float(jnp.max(jnp.abs(out_big.astype(jnp.float32) - ref_big)))

    print("KERNEL_OK")
</pallas_src>

<mosaic_0001>
module attributes {stable_mosaic.version = 11 : i64} {
  func.func @generator_kernel(%arg0: i32, %arg1: memref<16x138xbf16, #tpu.memory_space<vmem>>, %arg2: memref<138x512xbf16, #tpu.memory_space<vmem>>, %arg3: memref<1x512xf32, #tpu.memory_space<vmem>>, %arg4: memref<512x784xbf16, #tpu.memory_space<vmem>>, %arg5: memref<1x784xf32, #tpu.memory_space<vmem>>, %arg6: memref<16x784xbf16, #tpu.memory_space<vmem>>) attributes {dimension_semantics = [#tpu.dimension_semantics<parallel>], iteration_bounds = array<i64: 1>, scalar_prefetch = 0 : i64, scratch_operands = 0 : i64, tpu.core_type = #tpu.core_type<tc>, window_params = [{transform_indices = @transform_0, window_bounds = array<i64: 16, 138>}, {pipeline_mode = #tpu.pipeline_mode<synchronous>, transform_indices = @transform_1, window_bounds = array<i64: 138, 512>}, {pipeline_mode = #tpu.pipeline_mode<synchronous>, transform_indices = @transform_2, window_bounds = array<i64: 1, 512>}, {pipeline_mode = #tpu.pipeline_mode<synchronous>, transform_indices = @transform_3, window_bounds = array<i64: 512, 784>}, {pipeline_mode = #tpu.pipeline_mode<synchronous>, transform_indices = @transform_4, window_bounds = array<i64: 1, 784>}, {transform_indices = @transform_5, window_bounds = array<i64: 16, 784>}]} {
    %c0 = arith.constant 0 : index
    %c0_0 = arith.constant 0 : index
    %0 = vector.load %arg1[%c0, %c0_0] : memref<16x138xbf16, #tpu.memory_space<vmem>>, vector<16x138xbf16>
    %c0_1 = arith.constant 0 : index
    %c0_2 = arith.constant 0 : index
    %1 = vector.load %arg2[%c0_1, %c0_2] : memref<138x512xbf16, #tpu.memory_space<vmem>>, vector<138x512xbf16>
    %cst = arith.constant dense<0.000000e+00> : vector<16x512xf32>
    %2 = tpu.matmul %0, %1, %cst {dimension_numbers = #tpu.dot_dimension_numbers<[1], [0], [0], [1], [0, 0, 1, 1], [], []>} : vector<16x138xbf16>, vector<138x512xbf16>, vector<16x512xf32> -> vector<16x512xf32>
    %c0_3 = arith.constant 0 : index
    %c0_4 = arith.constant 0 : index
    %3 = vector.load %arg3[%c0_3, %c0_4] : memref<1x512xf32, #tpu.memory_space<vmem>>, vector<1x512xf32>
    %4 = vector.broadcast %3 : vector<1x512xf32> to vector<16x512xf32>
    %5 = arith.addf %2, %4 : vector<16x512xf32>
    %cst_5 = arith.constant 0.000000e+00 : f32
    %6 = vector.broadcast %cst_5 : f32 to vector<16x512xf32>
    %7 = arith.cmpf ogt, %5, %6 : vector<16x512xf32>
    %cst_6 = arith.constant 2.000000e-01 : f32
    %8 = vector.broadcast %cst_6 : f32 to vector<16x512xf32>
    %9 = arith.mulf %8, %5 : vector<16x512xf32>
    %10 = arith.select %7, %5, %9 : vector<16x512xi1>, vector<16x512xf32>
    %11 = arith.truncf %10 : vector<16x512xf32> to vector<16x512xbf16>
    %c0_7 = arith.constant 0 : index
    %c0_8 = arith.constant 0 : index
    %12 = vector.load %arg4[%c0_7, %c0_8] : memref<512x784xbf16, #tpu.memory_space<vmem>>, vector<512x784xbf16>
    %cst_9 = arith.constant dense<0.000000e+00> : vector<16x784xf32>
    %13 = tpu.matmul %11, %12, %cst_9 {dimension_numbers = #tpu.dot_dimension_numbers<[1], [0], [0], [1], [0, 0, 1, 1], [], []>} : vector<16x512xbf16>, vector<512x784xbf16>, vector<16x784xf32> -> vector<16x784xf32>
    %c0_10 = arith.constant 0 : index
    %c0_11 = arith.constant 0 : index
    %14 = vector.load %arg5[%c0_10, %c0_11] : memref<1x784xf32, #tpu.memory_space<vmem>>, vector<1x784xf32>
    %15 = vector.broadcast %14 : vector<1x784xf32> to vector<16x784xf32>
    %16 = arith.addf %13, %15 : vector<16x784xf32>
    %17 = math.tanh %16 : vector<16x784xf32>
    %18 = arith.truncf %17 : vector<16x784xf32> to vector<16x784xbf16>
    %c0_12 = arith.constant 0 : index
    %c0_13 = arith.constant 0 : index
    %19 = vector.load %arg6[%c0_12, %c0_13] : memref<16x784xbf16, #tpu.memory_space<vmem>>, vector<16x784xbf16>
    tpu.vector_store %arg6[%c0_12, %c0_13], %18 {strides = array<i32>} : memref<16x784xbf16, #tpu.memory_space<vmem>>, vector<16x784xbf16>,
    return
  }
  func.func @transform_0(%arg0: i32) -> (i32, i32) {
    %c0_i32 = arith.constant 0 : i32
    %c0_i32_0 = arith.constant 0 : i32
    return %arg0, %c0_i32 : i32, i32
  }
  func.func @transform_1(%arg0: i32) -> (i32, i32) {
    %c0_i32 = arith.constant 0 : i32
    %c0_i32_0 = arith.constant 0 : i32
    %c0_i32_1 = arith.constant 0 : i32
    return %c0_i32, %c0_i32_0 : i32, i32
  }
  func.func @transform_2(%arg0: i32) -> (i32, i32) {
    %c0_i32 = arith.constant 0 : i32
    %c0_i32_0 = arith.constant 0 : i32
    %c0_i32_1 = arith.constant 0 : i32
    return %c0_i32, %c0_i32_0 : i32, i32
  }
  func.func @transform_3(%arg0: i32) -> (i32, i32) {
    %c0_i32 = arith.constant 0 : i32
    %c0_i32_0 = arith.constant 0 : i32
    %c0_i32_1 = arith.constant 0 : i32
    return %c0_i32, %c0_i32_0 : i32, i32
  }
  func.func @transform_4(%arg0: i32) -> (i32, i32) {
    %c0_i32 = arith.constant 0 : i32
    %c0_i32_0 = arith.constant 0 : i32
    %c0_i32_1 = arith.constant 0 : i32
    return %c0_i32, %c0_i32_0 : i32, i32
  }
  func.func @transform_5(%arg0: i32) -> (i32, i32) {
    %c0_i32 = arith.constant 0 : i32
    %c0_i32_0 = arith.constant 0 : i32
    return %arg0, %c0_i32 : i32, i32
  }
}

</mosaic_0001>

<llo_original>
// kernel: generator_forward.1
$region0: #{generator_forward.1}
  #allocation0 [shape = 'u32[]', space=smem, size = 0x4, offset = 0x4, fixed_abs, tag = 'smem constant byte address 0x4 - core index']
  #allocation1 [shape = 'u32[144,128]{1,0:T(1,128)}', space=vmem, size = 0x12000, scoped, tag = 'internal scratch']
  %s0 = inlined_call_operand.vmem [shape: bf16[16,138], index: 0, kind: input, shape index: {}]
  %s1 = inlined_call_operand.vmem [shape: bf16[138,512], index: 1, kind: input, shape index: {}]
  %s2 = inlined_call_operand.vmem [shape: f32[1,512], index: 2, kind: input, shape index: {}]
  %s3 = inlined_call_operand.vmem [shape: bf16[512,784], index: 3, kind: input, shape index: {}]
  %s4 = inlined_call_operand.vmem [shape: f32[1,784], index: 4, kind: input, shape index: {}]
  %s5 = inlined_call_operand.vmem [shape: bf16[16,784], index: 5, kind: output, shape index: {}]
  %s6 = sld [smem:[#allocation0]]
  $region30: #{generator_forward.1} parent=0
    _
  %s8 = ssub.s32 1, %s6
  %s9 = scalar_select 0, %s8, %s6
  // Predicated region
  $region2: #{generator_forward.1} parent=0 // pred_check
    _
  $region3: #{generator_forward.1} parent=0 // pred_check_branch
    %11 = sbr.rel (0) target = $region5
  $region4: #{generator_forward.1} parent=0 // pred_region
    _
  $region5: #{generator_forward.1} parent=0 // pred_fallthru
    _
  // Predicated region
  $region6: #{generator_forward.1} parent=0 // pred_check
    _
  $region7: #{generator_forward.1} parent=0 // pred_check_branch
    %13 = sbr.rel (0) target = $region9
  $region8: #{generator_forward.1} parent=0 // pred_region
    _
  $region9: #{generator_forward.1} parent=0 // pred_fallthru
    _
  // Predicated region
  $region10: #{generator_forward.1} parent=0 // pred_check
    _
  $region11: #{generator_forward.1} parent=0 // pred_check_branch
    %15 = sbr.rel (0) target = $region13
  $region12: #{generator_forward.1} parent=0 // pred_region
    _
  $region13: #{generator_forward.1} parent=0 // pred_fallthru
    _
  // Predicated region
  $region14: #{generator_forward.1} parent=0 // pred_check
    _
  $region15: #{generator_forward.1} parent=0 // pred_check_branch
    %17 = sbr.rel (0) target = $region17
  $region16: #{generator_forward.1} parent=0 // pred_region
    _
  $region17: #{generator_forward.1} parent=0 // pred_fallthru
    _
  // Predicated region
  $region18: #{generator_forward.1} parent=0 // pred_check
    _
  $region19: #{generator_forward.1} parent=0 // pred_check_branch
    %19 = sbr.rel (0) target = $region21
  $region20: #{generator_forward.1} parent=0 // pred_region
    _
  $region21: #{generator_forward.1} parent=0 // pred_fallthru
    _
  %v21 = vld [vmem:[%s0] sm:$0xff]
  %v22 = vld [vmem:[%s0 + $0x8] sm:$0xff]
  %v23 = vld [vmem:[%s1] sm:$0xff]
  %v24 = vld [vmem:[%s1 + $0x8] sm:$0xff]
  %v25 = vld [vmem:[%s1 + $0x10] sm:$0xff]
  %v26 = vld [vmem:[%s1 + $0x18] sm:$0xff]
  %v27 = vld [vmem:[%s1 + $0x20] sm:$0xff]
  %v28 = vld [vmem:[%s1 + $0x28] sm:$0xff]
  %v29 = vld [vmem:[%s1 + $0x30] sm:$0xff]
  %v30 = vld [vmem:[%s1 + $0x38] sm:$0xff]
  %v31 = vld [vmem:[%s1 + $0x40] sm:$0xff]
  %v32 = vld [vmem:[%s1 + $0x48] sm:$0xff]
  %v33 = vld [vmem:[%s1 + $0x50] sm:$0xff]
  %v34 = vld [vmem:[%s1 + $0x58] sm:$0xff]
  %v35 = vld [vmem:[%s1 + $0x60] sm:$0xff]
  %v36 = vld [vmem:[%s1 + $0x68] sm:$0xff]
  %v37 = vld [vmem:[%s1 + $0x70] sm:$0xff]
  %v38 = vld [vmem:[%s1 + $0x78] sm:$0xff]
  %v39 = vld [vmem:[%s1 + $0x80] sm:$0xff]
  %v40 = vld [vmem:[%s1 + $0x88] sm:$0xff]
  %v41 = vld [vmem:[%s1 + $0x90] sm:$0xff]
  %v42 = vld [vmem:[%s1 + $0x98] sm:$0xff]
  %v43 = vld [vmem:[%s1 + $0xa0] sm:$0xff]
  %v44 = vld [vmem:[%s1 + $0xa8] sm:$0xff]
  %v45 = vld [vmem:[%s1 + $0xb0] sm:$0xff]
  %v46 = vld [vmem:[%s1 + $0xb8] sm:$0xff]
  %v47 = vld [vmem:[%s1 + $0xc0] sm:$0xff]
  %v48 = vld [vmem:[%s1 + $0xc8] sm:$0xff]
  %v49 = vld [vmem:[%s1 + $0xd0] sm:$0xff]
  %v50 = vld [vmem:[%s1 + $0xd8] sm:$0xff]
  %v51 = vld [vmem:[%s1 + $0xe0] sm:$0xff]
  %v52 = vld [vmem:[%s1 + $0xe8] sm:$0xff]
  %v53 = vld [vmem:[%s1 + $0xf0] sm:$0xff]
  %v54 = vld [vmem:[%s1 + $0xf8] sm:$0xff]
  %v55 = vld [vmem:[%s1 + $0x100] sm:$0xff]
  %v56 = vld [vmem:[%s1 + $0x108] sm:$0xff]
  %v57 = vld [vmem:[%s1 + $0x110] sm:$0x11]
  %v58 = vld [vmem:[%s1 + $0x118] sm:$0x11]
  %v59 = vld [vmem:[%s2] sm:$0xf]
  %v61 = vlaneseq
  %v62 = vshrl.u32 %v61, 7
  %v63 = vsub.s32 0, %v62
  %v64 = vrot.slane %v59, %v63
  %v65 = vlaneseq
  %v66 = vshrl.u32 %v65, 7
  %v67 = vsub.s32 1, %v66
  %v68 = vrot.slane %v59, %v67
  %v69 = vlaneseq
  %v70 = vshrl.u32 %v69, 7
  %v71 = vsub.s32 2, %v70
  %v72 = vrot.slane %v59, %v71
  %v73 = vlaneseq
  %v74 = vshrl.u32 %v73, 7
  %v75 = vsub.s32 3, %v74
  %v76 = vrot.slane %v59, %v75
  %v83 = vunpack.c.l.b16 %v21
  %v84 = vunpack.c.h.b16 %v21
  %v85 = vunpack.c.l.b16 %v22
  %v86 = vunpack.c.h.b16 %v22
  %v87 = vpack.c.b16 %v85, %v83
  %v88 = vpack.c.b16 %v86, %v84
  %v126 = vunpack.c.l.b16 %v23
  %v127 = vunpack.c.h.b16 %v23
  %v128 = vunpack.c.l.b16 %v24
  %v129 = vunpack.c.h.b16 %v24
  %v130 = vunpack.c.l.b16 %v25
  %v131 = vunpack.c.h.b16 %v25
  %v132 = vunpack.c.l.b16 %v26
  %v133 = vunpack.c.h.b16 %v26
  %v134 = vunpack.c.l.b16 %v27
  %v135 = vunpack.c.h.b16 %v27
  %v136 = vunpack.c.l.b16 %v28
  %v137 = vunpack.c.h.b16 %v28
  %v138 = vunpack.c.l.b16 %v29
  %v139 = vunpack.c.h.b16 %v29
  %v140 = vunpack.c.l.b16 %v30
  %v141 = vunpack.c.h.b16 %v30
  %v142 = vunpack.c.l.b16 %v31
  %v143 = vunpack.c.h.b16 %v31
  %v144 = vunpack.c.l.b16 %v32
  %v145 = vunpack.c.h.b16 %v32
  %v146 = vunpack.c.l.b16 %v33
  %v147 = vunpack.c.h.b16 %v33
  %v148 = vunpack.c.l.b16 %v34
  %v149 = vunpack.c.h.b16 %v34
  %v150 = vunpack.c.l.b16 %v35
  %v151 = vunpack.c.h.b16 %v35
  %v152 = vunpack.c.l.b16 %v36
  %v153 = vunpack.c.h.b16 %v36
  %v154 = vunpack.c.l.b16 %v37
  %v155 = vunpack.c.h.b16 %v37
  %v156 = vunpack.c.l.b16 %v38
  %v157 = vunpack.c.h.b16 %v38
  %v158 = vunpack.c.l.b16 %v39
  %v159 = vunpack.c.h.b16 %v39
  %v160 = vunpack.c.l.b16 %v40
  %v161 = vunpack.c.h.b16 %v40
  %v162 = vunpack.c.l.b16 %v41
  %v163 = vunpack.c.h.b16 %v41
  %v164 = vunpack.c.l.b16 %v42
  %v165 = vunpack.c.h.b16 %v42
  %v166 = vunpack.c.l.b16 %v43
  %v167 = vunpack.c.h.b16 %v43
  %v168 = vunpack.c.l.b16 %v44
  %v169 = vunpack.c.h.b16 %v44
  %v170 = vunpack.c.l.b16 %v45
  %v171 = vunpack.c.h.b16 %v45
  %v172 = vunpack.c.l.b16 %v46
  %v173 = vunpack.c.h.b16 %v46
  %v174 = vunpack.c.l.b16 %v47
  %v175 = vunpack.c.h.b16 %v47
  %v176 = vunpack.c.l.b16 %v48
  %v177 = vunpack.c.h.b16 %v48
  %v178 = vunpack.c.l.b16 %v49
  %v179 = vunpack.c.h.b16 %v49
  %v180 = vunpack.c.l.b16 %v50
  %v181 = vunpack.c.h.b16 %v50
  %v182 = vunpack.c.l.b16 %v51
  %v183 = vunpack.c.h.b16 %v51
  %v184 = vunpack.c.l.b16 %v52
  %v185 = vunpack.c.h.b16 %v52
  %v186 = vunpack.c.l.b16 %v53
  %v187 = vunpack.c.h.b16 %v53
  %v188 = vunpack.c.l.b16 %v54
  %v189 = vunpack.c.h.b16 %v54
  %v190 = vunpack.c.l.b16 %v55
  %v191 = vunpack.c.h.b16 %v55
  %v192 = vunpack.c.l.b16 %v56
  %v193 = vunpack.c.h.b16 %v56
  %v194 = vunpack.c.l.b16 %v57
  %v195 = vunpack.c.h.b16 %v57
  %v196 = vunpack.c.l.b16 %v58
  %v197 = vunpack.c.h.b16 %v58
  %v198 = vpack.c.b16 %v130, %v126
  %v199 = vpack.c.b16 %v131, %v127
  %v200 = vpack.c.b16 %v132, %v128
  %v201 = vpack.c.b16 %v133, %v129
  %v202 = vpack.c.b16 %v138, %v134
  %v203 = vpack.c.b16 %v139, %v135
  %v204 = vpack.c.b16 %v140, %v136
  %v205 = vpack.c.b16 %v141, %v137
  %v206 = vpack.c.b16 %v146, %v142
  %v207 = vpack.c.b16 %v147, %v143
  %v208 = vpack.c.b16 %v148, %v144
  %v209 = vpack.c.b16 %v149, %v145
  %v210 = vpack.c.b16 %v154, %v150
  %v211 = vpack.c.b16 %v155, %v151
  %v212 = vpack.c.b16 %v156, %v152
  %v213 = vpack.c.b16 %v157, %v153
  %v214 = vpack.c.b16 %v162, %v158
  %v215 = vpack.c.b16 %v163, %v159
  %v216 = vpack.c.b16 %v164, %v160
  %v217 = vpack.c.b16 %v165, %v161
  %v218 = vpack.c.b16 %v170, %v166
  %v219 = vpack.c.b16 %v171, %v167
  %v220 = vpack.c.b16 %v172, %v168
  %v221 = vpack.c.b16 %v173, %v169
  %v222 = vpack.c.b16 %v178, %v174
  %v223 = vpack.c.b16 %v179, %v175
  %v224 = vpack.c.b16 %v180, %v176
  %v225 = vpack.c.b16 %v181, %v177
  %v226 = vpack.c.b16 %v186, %v182
  %v227 = vpack.c.b16 %v187, %v183
  %v228 = vpack.c.b16 %v188, %v184
  %v229 = vpack.c.b16 %v189, %v185
  %v230 = vpack.c.b16 %v194, %v190
  %v231 = vpack.c.b16 %v195, %v191
  %v232 = vpack.c.b16 %v196, %v192
  %v233 = vpack.c.b16 %v197, %v193
  %vm266 = vcmask 80896
  %v268 = vsel %vm266, %v88, 0
  %vm270 = vcmask 1044480
  %v272 = vsel %vm270, %v230, 0
  %v275 = vsel %vm270, %v231, 0
  %v278 = vsel %vm270, %v232, 0
  %v281 = vsel %vm270, %v233, 0
  %283 = vmatprep.subr.bf16.mxu0 %v227
  %284 = vmatpush1.bf16.msra.mxu0 %v226
  %285 = vmatprep.subr.bf16.mxu0 %v223
  %286 = vmatpush1.bf16.msra.mxu0 %v222
  %287 = vmatprep.subr.bf16.mxu0 %v219
  %288 = vmatpush1.bf16.msra.mxu0 %v218
  %289 = vmatprep.subr.bf16.mxu0 %v215
  %290 = vmatpush1.bf16.msra.mxu0 %v214
  %291 = vmatprep.subr.bf16.mxu0 %v211
  %292 = vmatpush1.bf16.msra.mxu0 %v210
  %293 = vmatprep.subr.bf16.mxu0 %v207
  %294 = vmatpush1.bf16.msra.mxu0 %v206
  %295 = vmatprep.subr.bf16.mxu0 %v203
  %296 = vmatpush1.bf16.msra.mxu0 %v202
  %297 = vmatprep.subr.bf16.mxu0 %v199
  %298 = vmatpush1.bf16.msra.mxu0 %v198
  %299 = vmatprep.subr.bf16.mxu0 0
  %300 = vmatpush2.bf16.msra.mxu0 0
  %301 = vmatprep.subr.bf16.mxu0 0
  %302 = vmatpush2.bf16.msra.mxu0 0
  %303 = vmatprep.subr.bf16.mxu0 0
  %304 = vmatpush2.bf16.msra.mxu0 0
  %305 = vmatprep.subr.bf16.mxu0 0
  %306 = vmatpush2.bf16.msra.mxu0 0
  %307 = vmatprep.subr.bf16.mxu0 0
  %308 = vmatpush2.bf16.msra.mxu0 0
  %309 = vmatprep.subr.bf16.mxu0 0
  %310 = vmatpush2.bf16.msra.mxu0 0
  %311 = vmatprep.subr.bf16.mxu0 0
  %312 = vmatpush2.bf16.msra.mxu0 0
  %313 = vmatprep.subr.bf16.mxu0 %v275
  %314 = vmatpush2.bf16.msra.mxu0 %v272
  %315 = vmatprep.mubr.bf16.mxu0 %v268
  %316 = vmatmul.mubr.bf16.gmra.mxu0 %v87
  %v317 = vpop.f32.mrf.mxu0
  %v318 = vadd.f32 %v64, %v317
  %v319 = vpop.f32.mrf.mxu0
  %v320 = vadd.f32 %v68, %v319
  %v321 = vpop.f32.mrf.mxu0
  %v322 = vadd.f32 %v64, %v321
  %v323 = vpop.f32.mrf.mxu0
  %v324 = vadd.f32 %v68, %v323
  %325 = vdwg.mxu0
  %326 = vmatprep.subr.bf16.mxu0 %v229
  %327 = vmatpush1.bf16.msra.mxu0 %v228
  %328 = vmatprep.subr.bf16.mxu0 %v225
  %329 = vmatpush1.bf16.msra.mxu0 %v224
  %330 = vmatprep.subr.bf16.mxu0 %v221
  %331 = vmatpush1.bf16.msra.mxu0 %v220
  %332 = vmatprep.subr.bf16.mxu0 %v217
  %333 = vmatpush1.bf16.msra.mxu0 %v216
  %334 = vmatprep.subr.bf16.mxu0 %v213
  %335 = vmatpush1.bf16.msra.mxu0 %v212
  %336 = vmatprep.subr.bf16.mxu0 %v209
  %337 = vmatpush1.bf16.msra.mxu0 %v208
  %338 = vmatprep.subr.bf16.mxu0 %v205
  %339 = vmatpush1.bf16.msra.mxu0 %v204
  %340 = vmatprep.subr.bf16.mxu0 %v201
  %341 = vmatpush1.bf16.msra.mxu0 %v200
  %342 = vmatprep.subr.bf16.mxu0 0
  %343 = vmatpush2.bf16.msra.mxu0 0
  %344 = vmatprep.subr.bf16.mxu0 0
  %345 = vmatpush2.bf16.msra.mxu0 0
  %346 = vmatprep.subr.bf16.mxu0 0
  %347 = vmatpush2.bf16.msra.mxu0 0
  %348 = vmatprep.subr.bf16.mxu0 0
  %349 = vmatpush2.bf16.msra.mxu0 0
  %350 = vmatprep.subr.bf16.mxu0 0
  %351 = vmatpush2.bf16.msra.mxu0 0
  %352 = vmatprep.subr.bf16.mxu0 0
  %353 = vmatpush2.bf16.msra.mxu0 0
  %354 = vmatprep.subr.bf16.mxu0 0
  %355 = vmatpush2.bf16.msra.mxu0 0
  %356 = vmatprep.subr.bf16.mxu0 %v281
  %357 = vmatpush2.bf16.msra.mxu0 %v278
  %358 = vmatprep.mubr.bf16.mxu0 %v268
  %359 = vmatmul.mubr.bf16.gmra.mxu0 %v87
  %v360 = vpop.f32.mrf.mxu0
  %v361 = vadd.f32 %v72, %v360
  %v362 = vpop.f32.mrf.mxu0
  %v363 = vadd.f32 %v76, %v362
  %v364 = vpop.f32.mrf.mxu0
  %v365 = vadd.f32 %v72, %v364
  %v366 = vpop.f32.mrf.mxu0
  %v367 = vadd.f32 %v76, %v366
  %368 = vdwg.mxu0
  %vm369 = vcmp.gt.f32.partialorder %v318, 0.0
  %vm370 = vcmp.gt.f32.partialorder %v320, 0.0
  %vm371 = vcmp.gt.f32.partialorder %v361, 0.0
  %vm372 = vcmp.gt.f32.partialorder %v363, 0.0
  %vm373 = vcmp.gt.f32.partialorder %v322, 0.0
  %vm374 = vcmp.gt.f32.partialorder %v324, 0.0
  %vm375 = vcmp.gt.f32.partialorder %v365, 0.0
  %vm376 = vcmp.gt.f32.partialorder %v367, 0.0
  %v377 = vmul.f32 %v318, 0.2
  %v378 = vmul.f32 %v320, 0.2
  %v379 = vmul.f32 %v361, 0.2
  %v380 = vmul.f32 %v363, 0.2
  %v381 = vmul.f32 %v322, 0.2
  %v382 = vmul.f32 %v324, 0.2
  %v383 = vmul.f32 %v365, 0.2
  %v384 = vmul.f32 %v367, 0.2
  %v385 = vsel %vm369, %v318, %v377
  %v386 = vsel %vm370, %v320, %v378
  %v387 = vsel %vm371, %v361, %v379
  %v388 = vsel %vm372, %v363, %v380
  %v389 = vsel %vm373, %v322, %v381
  %v390 = vsel %vm374, %v324, %v382
  %v391 = vsel %vm375, %v365, %v383
  %v392 = vsel %vm376, %v367, %v384
  %v393 = vpack.c.bf16 %v389, %v385
  %v394 = vpack.c.bf16 %v390, %v386
  %v395 = vpack.c.bf16 %v391, %v387
  %v396 = vpack.c.bf16 %v392, %v388
  %v397 = vld [vmem:[%s3] sm:$0xff]
  %v398 = vld [vmem:[%s3 + $0x8] sm:$0xff]
  %v399 = vld [vmem:[%s3 + $0x10] sm:$0xff]
  %v400 = vld [vmem:[%s3 + $0x18] sm:$0xf]
  %v401 = vld [vmem:[%s3 + $0x1c] sm:$0xff]
  %v402 = vld [vmem:[%s3 + $0x24] sm:$0xff]
  %v403 = vld [vmem:[%s3 + $0x2c] sm:$0xff]
  %v404 = vld [vmem:[%s3 + $0x34] sm:$0xf]
  %v405 = vld [vmem:[%s3 + $0x38] sm:$0xff]
  %v406 = vld [vmem:[%s3 + $0x40] sm:$0xff]
  %v407 = vld [vmem:[%s3 + $0x48] sm:$0xff]
  %v408 = vld [vmem:[%s3 + $0x50] sm:$0xf]
  %v409 = vld [vmem:[%s3 + $0x54] sm:$0xff]
  %v410 = vld [vmem:[%s3 + $0x5c] sm:$0xff]
  %v411 = vld [vmem:[%s3 + $0x64] sm:$0xff]
  %v412 = vld [vmem:[%s3 + $0x6c] sm:$0xf]
  %v413 = vld [vmem:[%s3 + $0x70] sm:$0xff]
  %v414 = vld [vmem:[%s3 + $0x78] sm:$0xff]
  %v415 = vld [vmem:[%s3 + $0x80] sm:$0xff]
  %v416 = vld [vmem:[%s3 + $0x88] sm:$0xf]
  %v417 = vld [vmem:[%s3 + $0x8c] sm:$0xff]
  %v418 = vld [vmem:[%s3 + $0x94] sm:$0xff]
  %v419 = vld [vmem:[%s3 + $0x9c] sm:$0xff]
  %v420 = vld [vmem:[%s3 + $0xa4] sm:$0xf]
  %v421 = vld [vmem:[%s3 + $0xa8] sm:$0xff]
  %v422 = vld [vmem:[%s3 + $0xb0] sm:$0xff]
  %v423 = vld [vmem:[%s3 + $0xb8] sm:$0xff]
  %v424 = vld [vmem:[%s3 + $0xc0] sm:$0xf]
  %v425 = vld [vmem:[%s3 + $0xc4] sm:$0xff]
  %v426 = vld [vmem:[%s3 + $0xcc] sm:$0xff]
  %v427 = vld [vmem:[%s3 + $0xd4] sm:$0xff]
  %v428 = vld [vmem:[%s3 + $0xdc] sm:$0xf]
  %v429 = vld [vmem:[%s3 + $0xe0] sm:$0xff]
  %v430 = vld [vmem:[%s3 + $0xe8] sm:$0xff]
  %v431 = vld [vmem:[%s3 + $0xf0] sm:$0xff]
  %v432 = vld [vmem:[%s3 + $0xf8] sm:$0xf]
  %v433 = vld [vmem:[%s3 + $0xfc] sm:$0xff]
  %v434 = vld [vmem:[%s3 + $0x104] sm:$0xff]
  %v435 = vld [vmem:[%s3 + $0x10c] sm:$0xff]
  %v436 = vld [vmem:[%s3 + $0x114] sm:$0xf]
  %v437 = vld [vmem:[%s3 + $0x118] sm:$0xff]
  %v438 = vld [vmem:[%s3 + $0x120] sm:$0xff]
  %v439 = vld [vmem:[%s3 + $0x128] sm:$0xff]
  %v440 = vld [vmem:[%s3 + $0x130] sm:$0xf]
  %v441 = vld [vmem:[%s3 + $0x134] sm:$0xff]
  %v442 = vld [vmem:[%s3 + $0x13c] sm:$0xff]
  %v443 = vld [vmem:[%s3 + $0x144] sm:$0xff]
  %v444 = vld [vmem:[%s3 + $0x14c] sm:$0xf]
  %v445 = vld [vmem:[%s3 + $0x150] sm:$0xff]
  %v446 = vld [vmem:[%s3 + $0x158] sm:$0xff]
  %v447 = vld [vmem:[%s3 + $0x160] sm:$0xff]
  %v448 = vld [vmem:[%s3 + $0x168] sm:$0xf]
  %v449 = vld [vmem:[%s3 + $0x16c] sm:$0xff]
  %v450 = vld [vmem:[%s3 + $0x174] sm:$0xff]
  %v451 = vld [vmem:[%s3 + $0x17c] sm:$0xff]
  %v452 = vld [vmem:[%s3 + $0x184] sm:$0xf]
  %v453 = vld [vmem:[%s3 + $0x188] sm:$0xff]
  %v454 = vld [vmem:[%s3 + $0x190] sm:$0xff]
  %v455 = vld [vmem:[%s3 + $0x198] sm:$0xff]
  %v456 = vld [vmem:[%s3 + $0x1a0] sm:$0xf]
  %v457 = vld [vmem:[%s3 + $0x1a4] sm:$0xff]
  %v458 = vld [vmem:[%s3 + $0x1ac] sm:$0xff]
  %v459 = vld [vmem:[%s3 + $0x1b4] sm:$0xff]
  %v460 = vld [vmem:[%s3 + $0x1bc] sm:$0xf]
  %v461 = vld [vmem:[%s3 + $0x1c0] sm:$0xff]
  %v462 = vld [vmem:[%s3 + $0x1c8] sm:$0xff]
  %v463 = vld [vmem:[%s3 + $0x1d0] sm:$0xff]
  %v464 = vld [vmem:[%s3 + $0x1d8] sm:$0xf]
  %v465 = vld [vmem:[%s3 + $0x1dc] sm:$0xff]
  %v466 = vld [vmem:[%s3 + $0x1e4] sm:$0xff]
  %v467 = vld [vmem:[%s3 + $0x1ec] sm:$0xff]
  %v468 = vld [vmem:[%s3 + $0x1f4] sm:$0xf]
  %v469 = vld [vmem:[%s3 + $0x1f8] sm:$0xff]
  %v470 = vld [vmem:[%s3 + $0x200] sm:$0xff]
  %v471 = vld [vmem:[%s3 + $0x208] sm:$0xff]
  %v472 = vld [vmem:[%s3 + $0x210] sm:$0xf]
  %v473 = vld [vmem:[%s3 + $0x214] sm:$0xff]
  %v474 = vld [vmem:[%s3 + $0x21c] sm:$0xff]
  %v475 = vld [vmem:[%s3 + $0x224] sm:$0xff]
  %v476 = vld [vmem:[%s3 + $0x22c] sm:$0xf]
  %v477 = vld [vmem:[%s3 + $0x230] sm:$0xff]
  %v478 = vld [vmem:[%s3 + $0x238] sm:$0xff]
  %v479 = vld [vmem:[%s3 + $0x240] sm:$0xff]
  %v480 = vld [vmem:[%s3 + $0x248] sm:$0xf]
  %v481 = vld [vmem:[%s3 + $0x24c] sm:$0xff]
  %v482 = vld [vmem:[%s3 + $0x254] sm:$0xff]
  %v483 = vld [vmem:[%s3 + $0x25c] sm:$0xff]
  %v484 = vld [vmem:[%s3 + $0x264] sm:$0xf]
  %v485 = vld [vmem:[%s3 + $0x268] sm:$0xff]
  %v486 = vld [vmem:[%s3 + $0x270] sm:$0xff]
  %v487 = vld [vmem:[%s3 + $0x278] sm:$0xff]
  %v488 = vld [vmem:[%s3 + $0x280] sm:$0xf]
  %v489 = vld [vmem:[%s3 + $0x284] sm:$0xff]
  %v490 = vld [vmem:[%s3 + $0x28c] sm:$0xff]
  %v491 = vld [vmem:[%s3 + $0x294] sm:$0xff]
  %v492 = vld [vmem:[%s3 + $0x29c] sm:$0xf]
  %v493 = vld [vmem:[%s3 + $0x2a0] sm:$0xff]
  %v494 = vld [vmem:[%s3 + $0x2a8] sm:$0xff]
  %v495 = vld [vmem:[%s3 + $0x2b0] sm:$0xff]
  %v496 = vld [vmem:[%s3 + $0x2b8] sm:$0xf]
  %v497 = vld [vmem:[%s3 + $0x2bc] sm:$0xff]
  %v498 = vld [vmem:[%s3 + $0x2c4] sm:$0xff]
  %v499 = vld [vmem:[%s3 + $0x2cc] sm:$0xff]
  %v500 = vld [vmem:[%s3 + $0x2d4] sm:$0xf]
  %v501 = vld [vmem:[%s3 + $0x2d8] sm:$0xff]
  %v502 = vld [vmem:[%s3 + $0x2e0] sm:$0xff]
  %v503 = vld [vmem:[%s3 + $0x2e8] sm:$0xff]
  %v504 = vld [vmem:[%s3 + $0x2f0] sm:$0xf]
  %v505 = vld [vmem:[%s3 + $0x2f4] sm:$0xff]
  %v506 = vld [vmem:[%s3 + $0x2fc] sm:$0xff]
  %v507 = vld [vmem:[%s3 + $0x304] sm:$0xff]
  %v508 = vld [vmem:[%s3 + $0x30c] sm:$0xf]
  %v509 = vld [vmem:[%s3 + $0x310] sm:$0xff]
  %v510 = vld [vmem:[%s3 + $0x318] sm:$0xff]
  %v511 = vld [vmem:[%s3 + $0x320] sm:$0xff]
  %v512 = vld [vmem:[%s3 + $0x328] sm:$0xf]
  %v513 = vld [vmem:[%s3 + $0x32c] sm:$0xff]
  %v514 = vld [vmem:[%s3 + $0x334] sm:$0xff]
  %v515 = vld [vmem:[%s3 + $0x33c] sm:$0xff]
  %v516 = vld [vmem:[%s3 + $0x344] sm:$0xf]
  %v517 = vld [vmem:[%s3 + $0x348] sm:$0xff]
  %v518 = vld [vmem:[%s3 + $0x350] sm:$0xff]
  %v519 = vld [vmem:[%s3 + $0x358] sm:$0xff]
  %v520 = vld [vmem:[%s3 + $0x360] sm:$0xf]
  %v521 = vld [vmem:[%s3 + $0x364] sm:$0xff]
  %v522 = vld [vmem:[%s3 + $0x36c] sm:$0xff]
  %v523 = vld [vmem:[%s3 + $0x374] sm:$0xff]
  %v524 = vld [vmem:[%s3 + $0x37c] sm:$0xf]
  %v525 = vld [vmem:[%s3 + $0x380] sm:$0xff]
  %v526 = vld [vmem:[%s3 + $0x388] sm:$0xff]
  %v527 = vld [vmem:[%s3 + $0x390] sm:$0xff]
  %v528 = vld [vmem:[%s3 + $0x398] sm:$0xf]
  %v529 = vld [vmem:[%s3 + $0x39c] sm:$0xff]
  %v530 = vld [vmem:[%s3 + $0x3a4] sm:$0xff]
  %v531 = vld [vmem:[%s3 + $0x3ac] sm:$0xff]
  %v532 = vld [vmem:[%s3 + $0x3b4] sm:$0xf]
  %v533 = vld [vmem:[%s3 + $0x3b8] sm:$0xff]
  %v534 = vld [vmem:[%s3 + $0x3c0] sm:$0xff]
  %v535 = vld [vmem:[%s3 + $0x3c8] sm:$0xff]
  %v536 = vld [vmem:[%s3 + $0x3d0] sm:$0xf]
  %v537 = vld [vmem:[%s3 + $0x3d4] sm:$0xff]
  %v538 = vld [vmem:[%s3 + $0x3dc] sm:$0xff]
  %v539 = vld [vmem:[%s3 + $0x3e4] sm:$0xff]
  %v540 = vld [vmem:[%s3 + $0x3ec] sm:$0xf]
  %v541 = vld [vmem:[%s3 + $0x3f0] sm:$0xff]
  %v542 = vld [vmem:[%s3 + $0x3f8] sm:$0xff]
  %v543 = vld [vmem:[%s3 + $0x400] sm:$0xff]
  %v544 = vld [vmem:[%s3 + $0x408] sm:$0xf]
  %v545 = vld [vmem:[%s3 + $0x40c] sm:$0xff]
  %v546 = vld [vmem:[%s3 + $0x414] sm:$0xff]
  %v547 = vld [vmem:[%s3 + $0x41c] sm:$0xff]
  %v548 = vld [vmem:[%s3 + $0x424] sm:$0xf]
  %v549 = vld [vmem:[%s3 + $0x428] sm:$0xff]
  %v550 = vld [vmem:[%s3 + $0x430] sm:$0xff]
  %v551 = vld [vmem:[%s3 + $0x438] sm:$0xff]
  %v552 = vld [vmem:[%s3 + $0x440] sm:$0xf]
  %v553 = vld [vmem:[%s3 + $0x444] sm:$0xff]
  %v554 = vld [vmem:[%s3 + $0x44c] sm:$0xff]
  %v555 = vld [vmem:[%s3 + $0x454] sm:$0xff]
  %v556 = vld [vmem:[%s3 + $0x45c] sm:$0xf]
  %v557 = vld [vmem:[%s3 + $0x460] sm:$0xff]
  %v558 = vld [vmem:[%s3 + $0x468] sm:$0xff]
  %v559 = vld [vmem:[%s3 + $0x470] sm:$0xff]
  %v560 = vld [vmem:[%s3 + $0x478] sm:$0xf]
  %v561 = vld [vmem:[%s3 + $0x47c] sm:$0xff]
  %v562 = vld [vmem:[%s3 + $0x484] sm:$0xff]
  %v563 = vld [vmem:[%s3 + $0x48c] sm:$0xff]
  %v564 = vld [vmem:[%s3 + $0x494] sm:$0xf]
  %v565 = vld [vmem:[%s3 + $0x498] sm:$0xff]
  %v566 = vld [vmem:[%s3 + $0x4a0] sm:$0xff]
  %v567 = vld [vmem:[%s3 + $0x4a8] sm:$0xff]
  %v568 = vld [vmem:[%s3 + $0x4b0] sm:$0xf]
  %v569 = vld [vmem:[%s3 + $0x4b4] sm:$0xff]
  %v570 = vld [vmem:[%s3 + $0x4bc] sm:$0xff]
  %v571 = vld [vmem:[%s3 + $0x4c4] sm:$0xff]
  %v572 = vld [vmem:[%s3 + $0x4cc] sm:$0xf]
  %v573 = vld [vmem:[%s3 + $0x4d0] sm:$0xff]
  %v574 = vld [vmem:[%s3 + $0x4d8] sm:$0xff]
  %v575 = vld [vmem:[%s3 + $0x4e0] sm:$0xff]
  %v576 = vld [vmem:[%s3 + $0x4e8] sm:$0xf]
  %v577 = vld [vmem:[%s3 + $0x4ec] sm:$0xff]
  %v578 = vld [vmem:[%s3 + $0x4f4] sm:$0xff]
  %v579 = vld [vmem:[%s3 + $0x4fc] sm:$0xff]
  %v580 = vld [vmem:[%s3 + $0x504] sm:$0xf]
  %v581 = vld [vmem:[%s3 + $0x508] sm:$0xff]
  %v582 = vld [vmem:[%s3 + $0x510] sm:$0xff]
  %v583 = vld [vmem:[%s3 + $0x518] sm:$0xff]
  %v584 = vld [vmem:[%s3 + $0x520] sm:$0xf]
  %v585 = vld [vmem:[%s3 + $0x524] sm:$0xff]
  %v586 = vld [vmem:[%s3 + $0x52c] sm:$0xff]
  %v587 = vld [vmem:[%s3 + $0x534] sm:$0xff]
  %v588 = vld [vmem:[%s3 + $0x53c] sm:$0xf]
  %v589 = vld [vmem:[%s3 + $0x540] sm:$0xff]
  %v590 = vld [vmem:[%s3 + $0x548] sm:$0xff]
  %v591 = vld [vmem:[%s3 + $0x550] sm:$0xff]
  %v592 = vld [vmem:[%s3 + $0x558] sm:$0xf]
  %v593 = vld [vmem:[%s3 + $0x55c] sm:$0xff]
  %v594 = vld [vmem:[%s3 + $0x564] sm:$0xff]
  %v595 = vld [vmem:[%s3 + $0x56c] sm:$0xff]
  %v596 = vld [vmem:[%s3 + $0x574] sm:$0xf]
  %v597 = vld [vmem:[%s3 + $0x578] sm:$0xff]
  %v598 = vld [vmem:[%s3 + $0x580] sm:$0xff]
  %v599 = vld [vmem:[%s3 + $0x588] sm:$0xff]
  %v600 = vld [vmem:[%s3 + $0x590] sm:$0xf]
  %v601 = vld [vmem:[%s3 + $0x594] sm:$0xff]
  %v602 = vld [vmem:[%s3 + $0x59c] sm:$0xff]
  %v603 = vld [vmem:[%s3 + $0x5a4] sm:$0xff]
  %v604 = vld [vmem:[%s3 + $0x5ac] sm:$0xf]
  %v605 = vld [vmem:[%s3 + $0x5b0] sm:$0xff]
  %v606 = vld [vmem:[%s3 + $0x5b8] sm:$0xff]
  %v607 = vld [vmem:[%s3 + $0x5c0] sm:$0xff]
  %v608 = vld [vmem:[%s3 + $0x5c8] sm:$0xf]
  %v609 = vld [vmem:[%s3 + $0x5cc] sm:$0xff]
  %v610 = vld [vmem:[%s3 + $0x5d4] sm:$0xff]
  %v611 = vld [vmem:[%s3 + $0x5dc] sm:$0xff]
  %v612 = vld [vmem:[%s3 + $0x5e4] sm:$0xf]
  %v613 = vld [vmem:[%s3 + $0x5e8] sm:$0xff]
  %v614 = vld [vmem:[%s3 + $0x5f0] sm:$0xff]
  %v615 = vld [vmem:[%s3 + $0x5f8] sm:$0xff]
  %v616 = vld [vmem:[%s3 + $0x600] sm:$0xf]
  %v617 = vld [vmem:[%s3 + $0x604] sm:$0xff]
  %v618 = vld [vmem:[%s3 + $0x60c] sm:$0xff]
  %v619 = vld [vmem:[%s3 + $0x614] sm:$0xff]
  %v620 = vld [vmem:[%s3 + $0x61c] sm:$0xf]
  %v621 = vld [vmem:[%s3 + $0x620] sm:$0xff]
  %v622 = vld [vmem:[%s3 + $0x628] sm:$0xff]
  %v623 = vld [vmem:[%s3 + $0x630] sm:$0xff]
  %v624 = vld [vmem:[%s3 + $0x638] sm:$0xf]
  %v625 = vld [vmem:[%s3 + $0x63c] sm:$0xff]
  %v626 = vld [vmem:[%s3 + $0x644] sm:$0xff]
  %v627 = vld [vmem:[%s3 + $0x64c] sm:$0xff]
  %v628 = vld [vmem:[%s3 + $0x654] sm:$0xf]
  %v629 = vld [vmem:[%s3 + $0x658] sm:$0xff]
  %v630 = vld [vmem:[%s3 + $0x660] sm:$0xff]
  %v631 = vld [vmem:[%s3 + $0x668] sm:$0xff]
  %v632 = vld [vmem:[%s3 + $0x670] sm:$0xf]
  %v633 = vld [vmem:[%s3 + $0x674] sm:$0xff]
  %v634 = vld [vmem:[%s3 + $0x67c] sm:$0xff]
  %v635 = vld [vmem:[%s3 + $0x684] sm:$0xff]
  %v636 = vld [vmem:[%s3 + $0x68c] sm:$0xf]
  %v637 = vld [vmem:[%s3 + $0x690] sm:$0xff]
  %v638 = vld [vmem:[%s3 + $0x698] sm:$0xff]
  %v639 = vld [vmem:[%s3 + $0x6a0] sm:$0xff]
  %v640 = vld [vmem:[%s3 + $0x6a8] sm:$0xf]
  %v641 = vld [vmem:[%s3 + $0x6ac] sm:$0xff]
  %v642 = vld [vmem:[%s3 + $0x6b4] sm:$0xff]
  %v643 = vld [vmem:[%s3 + $0x6bc] sm:$0xff]
  %v644 = vld [vmem:[%s3 + $0x6c4] sm:$0xf]
  %v645 = vld [vmem:[%s3 + $0x6c8] sm:$0xff]
  %v646 = vld [vmem:[%s3 + $0x6d0] sm:$0xff]
  %v647 = vld [vmem:[%s3 + $0x6d8] sm:$0xff]
  %v648 = vld [vmem:[%s3 + $0x6e0] sm:$0xf]
  %v649 = vld [vmem:[%s3 + $0x6e4] sm:$0xff]
  %v650 = vld [vmem:[%s3 + $0x6ec] sm:$0xff]
  %v651 = vld [vmem:[%s3 + $0x6f4] sm:$0xff]
  %v652 = vld [vmem:[%s3 + $0x6fc] sm:$0xf]
  %v653 = vld [vmem:[%s4] sm:$0x7f]
  %v655 = vlaneseq
  %v656 = vshrl.u32 %v655, 7
  %v657 = vsub.s32 0, %v656
  %v658 = vrot.slane %v653, %v657
  %v659 = vlaneseq
  %v660 = vshrl.u32 %v659, 7
  %v661 = vsub.s32 1, %v660
  %v662 = vrot.slane %v653, %v661
  %v663 = vlaneseq
  %v664 = vshrl.u32 %v663, 7
  %v665 = vsub.s32 2, %v664
  %v666 = vrot.slane %v653, %v665
  %v667 = vlaneseq
  %v668 = vshrl.u32 %v667, 7
  %v669 = vsub.s32 3, %v668
  %v670 = vrot.slane %v653, %v669
  %v671 = vlaneseq
  %v672 = vshrl.u32 %v671, 7
  %v673 = vsub.s32 4, %v672
  %v674 = vrot.slane %v653, %v673
  %v675 = vlaneseq
  %v676 = vshrl.u32 %v675, 7
  %v677 = vsub.s32 5, %v676
  %v678 = vrot.slane %v653, %v677
  %v679 = vlaneseq
  %v680 = vshrl.u32 %v679, 7
  %v681 = vsub.s32 6, %v680
  %v682 = vrot.slane %v653, %v681
  %v946 = vunpack.c.l.b16 %v397
  %v947 = vunpack.c.h.b16 %v397
  %v948 = vunpack.c.l.b16 %v398
  %v949 = vunpack.c.h.b16 %v398
  %v950 = vunpack.c.l.b16 %v399
  %v951 = vunpack.c.h.b16 %v399
  %v952 = vunpack.c.l.b16 %v400
  %v953 = vunpack.c.l.b16 %v401
  %v954 = vunpack.c.h.b16 %v401
  %v955 = vunpack.c.l.b16 %v402
  %v956 = vunpack.c.h.b16 %v402
  %v957 = vunpack.c.l.b16 %v403
  %v958 = vunpack.c.h.b16 %v403
  %v959 = vunpack.c.l.b16 %v404
  %v960 = vunpack.c.l.b16 %v405
  %v961 = vunpack.c.h.b16 %v405
  %v962 = vunpack.c.l.b16 %v406
  %v963 = vunpack.c.h.b16 %v406
  %v964 = vunpack.c.l.b16 %v407
  %v965 = vunpack.c.h.b16 %v407
  %v966 = vunpack.c.l.b16 %v408
  %v967 = vunpack.c.l.b16 %v409
  %v968 = vunpack.c.h.b16 %v409
  %v969 = vunpack.c.l.b16 %v410
  %v970 = vunpack.c.h.b16 %v410
  %v971 = vunpack.c.l.b16 %v411
  %v972 = vunpack.c.h.b16 %v411
  %v973 = vunpack.c.l.b16 %v412
  %v974 = vunpack.c.l.b16 %v413
  %v975 = vunpack.c.h.b16 %v413
  %v976 = vunpack.c.l.b16 %v414
  %v977 = vunpack.c.h.b16 %v414
  %v978 = vunpack.c.l.b16 %v415
  %v979 = vunpack.c.h.b16 %v415
  %v980 = vunpack.c.l.b16 %v416
  %v981 = vunpack.c.l.b16 %v417
  %v982 = vunpack.c.h.b16 %v417
  %v983 = vunpack.c.l.b16 %v418
  %v984 = vunpack.c.h.b16 %v418
  %v985 = vunpack.c.l.b16 %v419
  %v986 = vunpack.c.h.b16 %v419
  %v987 = vunpack.c.l.b16 %v420
  %v988 = vunpack.c.l.b16 %v421
  %v989 = vunpack.c.h.b16 %v421
  %v990 = vunpack.c.l.b16 %v422
  %v991 = vunpack.c.h.b16 %v422
  %v992 = vunpack.c.l.b16 %v423
  %v993 = vunpack.c.h.b16 %v423
  %v994 = vunpack.c.l.b16 %v424
  %v995 = vunpack.c.l.b16 %v425
  %v996 = vunpack.c.h.b16 %v425
  %v997 = vunpack.c.l.b16 %v426
  %v998 = vunpack.c.h.b16 %v426
  %v999 = vunpack.c.l.b16 %v427
  %v1000 = vunpack.c.h.b16 %v427
  %v1001 = vunpack.c.l.b16 %v428
  %v1002 = vunpack.c.l.b16 %v429
  %v1003 = vunpack.c.h.b16 %v429
  %v1004 = vunpack.c.l.b16 %v430
  %v1005 = vunpack.c.h.b16 %v430
  %v1006 = vunpack.c.l.b16 %v431
  %v1007 = vunpack.c.h.b16 %v431
  %v1008 = vunpack.c.l.b16 %v432
  %v1009 = vunpack.c.l.b16 %v433
  %v1010 = vunpack.c.h.b16 %v433
  %v1011 = vunpack.c.l.b16 %v434
  %v1012 = vunpack.c.h.b16 %v434
  %v1013 = vunpack.c.l.b16 %v435
  %v1014 = vunpack.c.h.b16 %v435
  %v1015 = vunpack.c.l.b16 %v436
  %v1016 = vunpack.c.l.b16 %v437
  %v1017 = vunpack.c.h.b16 %v437
  %v1018 = vunpack.c.l.b16 %v438
  %v1019 = vunpack.c.h.b16 %v438
  %v1020 = vunpack.c.l.b16 %v439
  %v1021 = vunpack.c.h.b16 %v439
  %v1022 = vunpack.c.l.b16 %v440
  %v1023 = vunpack.c.l.b16 %v441
  %v1024 = vunpack.c.h.b16 %v441
  %v1025 = vunpack.c.l.b16 %v442
  %v1026 = vunpack.c.h.b16 %v442
  %v1027 = vunpack.c.l.b16 %v443
  %v1028 = vunpack.c.h.b16 %v443
  %v1029 = vunpack.c.l.b16 %v444
  %v1030 = vunpack.c.l.b16 %v445
  %v1031 = vunpack.c.h.b16 %v445
  %v1032 = vunpack.c.l.b16 %v446
  %v1033 = vunpack.c.h.b16 %v446
  %v1034 = vunpack.c.l.b16 %v447
  %v1035 = vunpack.c.h.b16 %v447
  %v1036 = vunpack.c.l.b16 %v448
  %v1037 = vunpack.c.l.b16 %v449
  %v1038 = vunpack.c.h.b16 %v449
  %v1039 = vunpack.c.l.b16 %v450
  %v1040 = vunpack.c.h.b16 %v450
  %v1041 = vunpack.c.l.b16 %v451
  %v1042 = vunpack.c.h.b16 %v451
  %v1043 = vunpack.c.l.b16 %v452
  %v1044 = vunpack.c.l.b16 %v453
  %v1045 = vunpack.c.h.b16 %v453
  %v1046 = vunpack.c.l.b16 %v454
  %v1047 = vunpack.c.h.b16 %v454
  %v1048 = vunpack.c.l.b16 %v455
  %v1049 = vunpack.c.h.b16 %v455
  %v1050 = vunpack.c.l.b16 %v456
  %v1051 = vunpack.c.l.b16 %v457
  %v1052 = vunpack.c.h.b16 %v457
  %v1053 = vunpack.c.l.b16 %v458
  %v1054 = vunpack.c.h.b16 %v458
  %v1055 = vunpack.c.l.b16 %v459
  %v1056 = vunpack.c.h.b16 %v459
  %v1057 = vunpack.c.l.b16 %v460
  %v1058 = vunpack.c.l.b16 %v461
  %v1059 = vunpack.c.h.b16 %v461
  %v1060 = vunpack.c.l.b16 %v462
  %v1061 = vunpack.c.h.b16 %v462
  %v1062 = vunpack.c.l.b16 %v463
  %v1063 = vunpack.c.h.b16 %v463
  %v1064 = vunpack.c.l.b16 %v464
  %v1065 = vunpack.c.l.b16 %v465
  %v1066 = vunpack.c.h.b16 %v465
  %v1067 = vunpack.c.l.b16 %v466
  %v1068 = vunpack.c.h.b16 %v466
  %v1069 = vunpack.c.l.b16 %v467
  %v1070 = vunpack.c.h.b16 %v467
  %v1071 = vunpack.c.l.b16 %v468
  %v1072 = vunpack.c.l.b16 %v469
  %v1073 = vunpack.c.h.b16 %v469
  %v1074 = vunpack.c.l.b16 %v470
  %v1075 = vunpack.c.h.b16 %v470
  %v1076 = vunpack.c.l.b16 %v471
  %v1077 = vunpack.c.h.b16 %v471
  %v1078 = vunpack.c.l.b16 %v472
  %v1079 = vunpack.c.l.b16 %v473
  %v1080 = vunpack.c.h.b16 %v473
  %v1081 = vunpack.c.l.b16 %v474
  %v1082 = vunpack.c.h.b16 %v474
  %v1083 = vunpack.c.l.b16 %v475
  %v1084 = vunpack.c.h.b16 %v475
  %v1085 = vunpack.c.l.b16 %v476
  %v1086 = vunpack.c.l.b16 %v477
  %v1087 = vunpack.c.h.b16 %v477
  %v1088 = vunpack.c.l.b16 %v478
  %v1089 = vunpack.c.h.b16 %v478
  %v1090 = vunpack.c.l.b16 %v479
  %v1091 = vunpack.c.h.b16 %v479
  %v1092 = vunpack.c.l.b16 %v480
  %v1093 = vunpack.c.l.b16 %v481
  %v1094 = vunpack.c.h.b16 %v481
  %v1095 = vunpack.c.l.b16 %v482
  %v1096 = vunpack.c.h.b16 %v482
  %v1097 = vunpack.c.l.b16 %v483
  %v1098 = vunpack.c.h.b16 %v483
  %v1099 = vunpack.c.l.b16 %v484
  %v1100 = vunpack.c.l.b16 %v485
  %v1101 = vunpack.c.h.b16 %v485
  %v1102 = vunpack.c.l.b16 %v486
  %v1103 = vunpack.c.h.b16 %v486
  %v1104 = vunpack.c.l.b16 %v487
  %v1105 = vunpack.c.h.b16 %v487
  %v1106 = vunpack.c.l.b16 %v488
  %v1107 = vunpack.c.l.b16 %v489
  %v1108 = vunpack.c.h.b16 %v489
  %v1109 = vunpack.c.l.b16 %v490
  %v1110 = vunpack.c.h.b16 %v490
  %v1111 = vunpack.c.l.b16 %v491
  %v1112 = vunpack.c.h.b16 %v491
  %v1113 = vunpack.c.l.b16 %v492
  %v1114 = vunpack.c.l.b16 %v493
  %v1115 = vunpack.c.h.b16 %v493
  %v1116 = vunpack.c.l.b16 %v494
  %v1117 = vunpack.c.h.b16 %v494
  %v1118 = vunpack.c.l.b16 %v495
  %v1119 = vunpack.c.h.b16 %v495
  %v1120 = vunpack.c.l.b16 %v496
  %v1121 = vunpack.c.l.b16 %v497
  %v1122 = vunpack.c.h.b16 %v497
  %v1123 = vunpack.c.l.b16 %v498
  %v1124 = vunpack.c.h.b16 %v498
  %v1125 = vunpack.c.l.b16 %v499
  %v1126 = vunpack.c.h.b16 %v499
  %v1127 = vunpack.c.l.b16 %v500
  %v1128 = vunpack.c.l.b16 %v501
  %v1129 = vunpack.c.h.b16 %v501
  %v1130 = vunpack.c.l.b16 %v502
  %v1131 = vunpack.c.h.b16 %v502
  %v1132 = vunpack.c.l.b16 %v503
  %v1133 = vunpack.c.h.b16 %v503
  %v1134 = vunpack.c.l.b16 %v504
  %v1135 = vunpack.c.l.b16 %v505
  %v1136 = vunpack.c.h.b16 %v505
  %v1137 = vunpack.c.l.b16 %v506
  %v1138 = vunpack.c.h.b16 %v506
  %v1139 = vunpack.c.l.b16 %v507
  %v1140 = vunpack.c.h.b16 %v507
  %v1141 = vunpack.c.l.b16 %v508
  %v1142 = vunpack.c.l.b16 %v509
  %v1143 = vunpack.c.h.b16 %v509
  %v1144 = vunpack.c.l.b16 %v510
  %v1145 = vunpack.c.h.b16 %v510
  %v1146 = vunpack.c.l.b16 %v511
  %v1147 = vunpack.c.h.b16 %v511
  %v1148 = vunpack.c.l.b16 %v512
  %v1149 = vunpack.c.l.b16 %v513
  %v1150 = vunpack.c.h.b16 %v513
  %v1151 = vunpack.c.l.b16 %v514
  %v1152 = vunpack.c.h.b16 %v514
  %v1153 = vunpack.c.l.b16 %v515
  %v1154 = vunpack.c.h.b16 %v515
  %v1155 = vunpack.c.l.b16 %v516
  %v1156 = vunpack.c.l.b16 %v517
  %v1157 = vunpack.c.h.b16 %v517
  %v1158 = vunpack.c.l.b16 %v518
  %v1159 = vunpack.c.h.b16 %v518
  %v1160 = vunpack.c.l.b16 %v519
  %v1161 = vunpack.c.h.b16 %v519
  %v1162 = vunpack.c.l.b16 %v520
  %v1163 = vunpack.c.l.b16 %v521
  %v1164 = vunpack.c.h.b16 %v521
  %v1165 = vunpack.c.l.b16 %v522
  %v1166 = vunpack.c.h.b16 %v522
  %v1167 = vunpack.c.l.b16 %v523
  %v1168 = vunpack.c.h.b16 %v523
  %v1169 = vunpack.c.l.b16 %v524
  %v1170 = vunpack.c.l.b16 %v525
  %v1171 = vunpack.c.h.b16 %v525
  %v1172 = vunpack.c.l.b16 %v526
  %v1173 = vunpack.c.h.b16 %v526
  %v1174 = vunpack.c.l.b16 %v527
  %v1175 = vunpack.c.h.b16 %v527
  %v1176 = vunpack.c.l.b16 %v528
  %v1177 = vunpack.c.l.b16 %v529
  %v1178 = vunpack.c.h.b16 %v529
  %v1179 = vunpack.c.l.b16 %v530
  %v1180 = vunpack.c.h.b16 %v530
  %v1181 = vunpack.c.l.b16 %v531
  %v1182 = vunpack.c.h.b16 %v531
  %v1183 = vunpack.c.l.b16 %v532
  %v1184 = vunpack.c.l.b16 %v533
  %v1185 = vunpack.c.h.b16 %v533
  %v1186 = vunpack.c.l.b16 %v534
  %v1187 = vunpack.c.h.b16 %v534
  %v1188 = vunpack.c.l.b16 %v535
  %v1189 = vunpack.c.h.b16 %v535
  %v1190 = vunpack.c.l.b16 %v536
  %v1191 = vunpack.c.l.b16 %v537
  %v1192 = vunpack.c.h.b16 %v537
  %v1193 = vunpack.c.l.b16 %v538
  %v1194 = vunpack.c.h.b16 %v538
  %v1195 = vunpack.c.l.b16 %v539
  %v1196 = vunpack.c.h.b16 %v539
  %v1197 = vunpack.c.l.b16 %v540
  %v1198 = vunpack.c.l.b16 %v541
  %v1199 = vunpack.c.h.b16 %v541
  %v1200 = vunpack.c.l.b16 %v542
  %v1201 = vunpack.c.h.b16 %v542
  %v1202 = vunpack.c.l.b16 %v543
  %v1203 = vunpack.c.h.b16 %v543
  %v1204 = vunpack.c.l.b16 %v544
  %v1205 = vunpack.c.l.b16 %v545
  %v1206 = vunpack.c.h.b16 %v545
  %v1207 = vunpack.c.l.b16 %v546
  %v1208 = vunpack.c.h.b16 %v546
  %v1209 = vunpack.c.l.b16 %v547
  %v1210 = vunpack.c.h.b16 %v547
  %v1211 = vunpack.c.l.b16 %v548
  %v1212 = vunpack.c.l.b16 %v549
  %v1213 = vunpack.c.h.b16 %v549
  %v1214 = vunpack.c.l.b16 %v550
  %v1215 = vunpack.c.h.b16 %v550
  %v1216 = vunpack.c.l.b16 %v551
  %v1217 = vunpack.c.h.b16 %v551
  %v1218 = vunpack.c.l.b16 %v552
  %v1219 = vunpack.c.l.b16 %v553
  %v1220 = vunpack.c.h.b16 %v553
  %v1221 = vunpack.c.l.b16 %v554
  %v1222 = vunpack.c.h.b16 %v554
  %v1223 = vunpack.c.l.b16 %v555
  %v1224 = vunpack.c.h.b16 %v555
  %v1225 = vunpack.c.l.b16 %v556
  %v1226 = vunpack.c.l.b16 %v557
  %v1227 = vunpack.c.h.b16 %v557
  %v1228 = vunpack.c.l.b16 %v558
  %v1229 = vunpack.c.h.b16 %v558
  %v1230 = vunpack.c.l.b16 %v559
  %v1231 = vunpack.c.h.b16 %v559
  %v1232 = vunpack.c.l.b16 %v560
  %v1233 = vunpack.c.l.b16 %v561
  %v1234 = vunpack.c.h.b16 %v561
  %v1235 = vunpack.c.l.b16 %v562
  %v1236 = vunpack.c.h.b16 %v562
  %v1237 = vunpack.c.l.b16 %v563
  %v1238 = vunpack.c.h.b16 %v563
  %v1239 = vunpack.c.l.b16 %v564
  %v1240 = vunpack.c.l.b16 %v565
  %v1241 = vunpack.c.h.b16 %v565
  %v1242 = vunpack.c.l.b16 %v566
  %v1243 = vunpack.c.h.b16 %v566
  %v1244 = vunpack.c.l.b16 %v567
  %v1245 = vunpack.c.h.b16 %v567
  %v1246 = vunpack.c.l.b16 %v568
  %v1247 = vunpack.c.l.b16 %v569
  %v1248 = vunpack.c.h.b16 %v569
  %v1249 = vunpack.c.l.b16 %v570
  %v1250 = vunpack.c.h.b16 %v570
  %v1251 = vunpack.c.l.b16 %v571
  %v1252 = vunpack.c.h.b16 %v571
  %v1253 = vunpack.c.l.b16 %v572
  %v1254 = vunpack.c.l.b16 %v573
  %v1255 = vunpack.c.h.b16 %v573
  %v1256 = vunpack.c.l.b16 %v574
  %v1257 = vunpack.c.h.b16 %v574
  %v1258 = vunpack.c.l.b16 %v575
  %v1259 = vunpack.c.h.b16 %v575
  %v1260 = vunpack.c.l.b16 %v576
  %v1261 = vunpack.c.l.b16 %v577
  %v1262 = vunpack.c.h.b16 %v577
  %v1263 = vunpack.c.l.b16 %v578
  %v1264 = vunpack.c.h.b16 %v578
  %v1265 = vunpack.c.l.b16 %v579
  %v1266 = vunpack.c.h.b16 %v579
  %v1267 = vunpack.c.l.b16 %v580
  %v1268 = vunpack.c.l.b16 %v581
  %v1269 = vunpack.c.h.b16 %v581
  %v1270 = vunpack.c.l.b16 %v582
  %v1271 = vunpack.c.h.b16 %v582
  %v1272 = vunpack.c.l.b16 %v583
  %v1273 = vunpack.c.h.b16 %v583
  %v1274 = vunpack.c.l.b16 %v584
  %v1275 = vunpack.c.l.b16 %v585
  %v1276 = vunpack.c.h.b16 %v585
  %v1277 = vunpack.c.l.b16 %v586
  %v1278 = vunpack.c.h.b16 %v586
  %v1279 = vunpack.c.l.b16 %v587
  %v1280 = vunpack.c.h.b16 %v587
  %v1281 = vunpack.c.l.b16 %v588
  %v1282 = vunpack.c.l.b16 %v589
  %v1283 = vunpack.c.h.b16 %v589
  %v1284 = vunpack.c.l.b16 %v590
  %v1285 = vunpack.c.h.b16 %v590
  %v1286 = vunpack.c.l.b16 %v591
  %v1287 = vunpack.c.h.b16 %v591
  %v1288 = vunpack.c.l.b16 %v592
  %v1289 = vunpack.c.l.b16 %v593
  %v1290 = vunpack.c.h.b16 %v593
  %v1291 = vunpack.c.l.b16 %v594
  %v1292 = vunpack.c.h.b16 %v594
  %v1293 = vunpack.c.l.b16 %v595
  %v1294 = vunpack.c.h.b16 %v595
  %v1295 = vunpack.c.l.b16 %v596
  %v1296 = vunpack.c.l.b16 %v597
  %v1297 = vunpack.c.h.b16 %v597
  %v1298 = vunpack.c.l.b16 %v598
  %v1299 = vunpack.c.h.b16 %v598
  %v1300 = vunpack.c.l.b16 %v599
  %v1301 = vunpack.c.h.b16 %v599
  %v1302 = vunpack.c.l.b16 %v600
  %v1303 = vunpack.c.l.b16 %v601
  %v1304 = vunpack.c.h.b16 %v601
  %v1305 = vunpack.c.l.b16 %v602
  %v1306 = vunpack.c.h.b16 %v602
  %v1307 = vunpack.c.l.b16 %v603
  %v1308 = vunpack.c.h.b16 %v603
  %v1309 = vunpack.c.l.b16 %v604
  %v1310 = vunpack.c.l.b16 %v605
  %v1311 = vunpack.c.h.b16 %v605
  %v1312 = vunpack.c.l.b16 %v606
  %v1313 = vunpack.c.h.b16 %v606
  %v1314 = vunpack.c.l.b16 %v607
  %v1315 = vunpack.c.h.b16 %v607
  %v1316 = vunpack.c.l.b16 %v608
  %v1317 = vunpack.c.l.b16 %v609
  %v1318 = vunpack.c.h.b16 %v609
  %v1319 = vunpack.c.l.b16 %v610
  %v1320 = vunpack.c.h.b16 %v610
  %v1321 = vunpack.c.l.b16 %v611
  %v1322 = vunpack.c.h.b16 %v611
  %v1323 = vunpack.c.l.b16 %v612
  %v1324 = vunpack.c.l.b16 %v613
  %v1325 = vunpack.c.h.b16 %v613
  %v1326 = vunpack.c.l.b16 %v614
  %v1327 = vunpack.c.h.b16 %v614
  %v1328 = vunpack.c.l.b16 %v615
  %v1329 = vunpack.c.h.b16 %v615
  %v1330 = vunpack.c.l.b16 %v616
  %v1331 = vunpack.c.l.b16 %v617
  %v1332 = vunpack.c.h.b16 %v617
  %v1333 = vunpack.c.l.b16 %v618
  %v1334 = vunpack.c.h.b16 %v618
  %v1335 = vunpack.c.l.b16 %v619
  %v1336 = vunpack.c.h.b16 %v619
  %v1337 = vunpack.c.l.b16 %v620
  %v1338 = vunpack.c.l.b16 %v621
  %v1339 = vunpack.c.h.b16 %v621
  %v1340 = vunpack.c.l.b16 %v622
  %v1341 = vunpack.c.h.b16 %v622
  %v1342 = vunpack.c.l.b16 %v623
  %v1343 = vunpack.c.h.b16 %v623
  %v1344 = vunpack.c.l.b16 %v624
  %v1345 = vunpack.c.l.b16 %v625
  %v1346 = vunpack.c.h.b16 %v625
  %v1347 = vunpack.c.l.b16 %v626
  %v1348 = vunpack.c.h.b16 %v626
  %v1349 = vunpack.c.l.b16 %v627
  %v1350 = vunpack.c.h.b16 %v627
  %v1351 = vunpack.c.l.b16 %v628
  %v1352 = vunpack.c.l.b16 %v629
  %v1353 = vunpack.c.h.b16 %v629
  %v1354 = vunpack.c.l.b16 %v630
  %v1355 = vunpack.c.h.b16 %v630
  %v1356 = vunpack.c.l.b16 %v631
  %v1357 = vunpack.c.h.b16 %v631
  %v1358 = vunpack.c.l.b16 %v632
  %v1359 = vunpack.c.l.b16 %v633
  %v1360 = vunpack.c.h.b16 %v633
  %v1361 = vunpack.c.l.b16 %v634
  %v1362 = vunpack.c.h.b16 %v634
  %v1363 = vunpack.c.l.b16 %v635
  %v1364 = vunpack.c.h.b16 %v635
  %v1365 = vunpack.c.l.b16 %v636
  %v1366 = vunpack.c.l.b16 %v637
  %v1367 = vunpack.c.h.b16 %v637
  %v1368 = vunpack.c.l.b16 %v638
  %v1369 = vunpack.c.h.b16 %v638
  %v1370 = vunpack.c.l.b16 %v639
  %v1371 = vunpack.c.h.b16 %v639
  %v1372 = vunpack.c.l.b16 %v640
  %v1373 = vunpack.c.l.b16 %v641
  %v1374 = vunpack.c.h.b16 %v641
  %v1375 = vunpack.c.l.b16 %v642
  %v1376 = vunpack.c.h.b16 %v642
  %v1377 = vunpack.c.l.b16 %v643
  %v1378 = vunpack.c.h.b16 %v643
  %v1379 = vunpack.c.l.b16 %v644
  %v1380 = vunpack.c.l.b16 %v645
  %v1381 = vunpack.c.h.b16 %v645
  %v1382 = vunpack.c.l.b16 %v646
  %v1383 = vunpack.c.h.b16 %v646
  %v1384 = vunpack.c.l.b16 %v647
  %v1385 = vunpack.c.h.b16 %v647
  %v1386 = vunpack.c.l.b16 %v648
  %v1387 = vunpack.c.l.b16 %v649
  %v1388 = vunpack.c.h.b16 %v649
  %v1389 = vunpack.c.l.b16 %v650
  %v1390 = vunpack.c.h.b16 %v650
  %v1391 = vunpack.c.l.b16 %v651
  %v1392 = vunpack.c.h.b16 %v651
  %v1393 = vunpack.c.l.b16 %v652
  %v1394 = vpack.c.b16 %v953, %v946
  %v1395 = vpack.c.b16 %v954, %v947
  %v1396 = vpack.c.b16 %v955, %v948
  %v1397 = vpack.c.b16 %v956, %v949
  %v1398 = vpack.c.b16 %v957, %v950
  %v1399 = vpack.c.b16 %v958, %v951
  %v1400 = vpack.c.b16 %v959, %v952
  %v1401 = vpack.c.b16 %v967, %v960
  %v1402 = vpack.c.b16 %v968, %v961
  %v1403 = vpack.c.b16 %v969, %v962
  %v1404 = vpack.c.b16 %v970, %v963
  %v1405 = vpack.c.b16 %v971, %v964
  %v1406 = vpack.c.b16 %v972, %v965
  %v1407 = vpack.c.b16 %v973, %v966
  %v1408 = vpack.c.b16 %v981, %v974
  %v1409 = vpack.c.b16 %v982, %v975
  %v1410 = vpack.c.b16 %v983, %v976
  %v1411 = vpack.c.b16 %v984, %v977
  %v1412 = vpack.c.b16 %v985, %v978
  %v1413 = vpack.c.b16 %v986, %v979
  %v1414 = vpack.c.b16 %v987, %v980
  %v1415 = vpack.c.b16 %v995, %v988
  %v1416 = vpack.c.b16 %v996, %v989
  %v1417 = vpack.c.b16 %v997, %v990
  %v1418 = vpack.c.b16 %v998, %v991
  %v1419 = vpack.c.b16 %v999, %v992
  %v1420 = vpack.c.b16 %v1000, %v993
  %v1421 = vpack.c.b16 %v1001, %v994
  %v1422 = vpack.c.b16 %v1009, %v1002
  %v1423 = vpack.c.b16 %v1010, %v1003
  %v1424 = vpack.c.b16 %v1011, %v1004
  %v1425 = vpack.c.b16 %v1012, %v1005
  %v1426 = vpack.c.b16 %v1013, %v1006
  %v1427 = vpack.c.b16 %v1014, %v1007
  %v1428 = vpack.c.b16 %v1015, %v1008
  %v1429 = vpack.c.b16 %v1023, %v1016
  %v1430 = vpack.c.b16 %v1024, %v1017
  %v1431 = vpack.c.b16 %v1025, %v1018
  %v1432 = vpack.c.b16 %v1026, %v1019
  %v1433 = vpack.c.b16 %v1027, %v1020
  %v1434 = vpack.c.b16 %v1028, %v1021
  %v1435 = vpack.c.b16 %v1029, %v1022
  %v1436 = vpack.c.b16 %v1037, %v1030
  %v1437 = vpack.c.b16 %v1038, %v1031
  %v1438 = vpack.c.b16 %v1039, %v1032
  %v1439 = vpack.c.b16 %v1040, %v1033
  %v1440 = vpack.c.b16 %v1041, %v1034
  %v1441 = vpack.c.b16 %v1042, %v1035
  %v1442 = vpack.c.b16 %v1043, %v1036
  %v1443 = vpack.c.b16 %v1051, %v1044
  %v1444 = vpack.c.b16 %v1052, %v1045
  %v1445 = vpack.c.b16 %v1053, %v1046
  %v1446 = vpack.c.b16 %v1054, %v1047
  %v1447 = vpack.c.b16 %v1055, %v1048
  %v1448 = vpack.c.b16 %v1056, %v1049
  %v1449 = vpack.c.b16 %v1057, %v1050
  %v1450 = vpack.c.b16 %v1065, %v1058
  %v1451 = vpack.c.b16 %v1066, %v1059
  %v1452 = vpack.c.b16 %v1067, %v1060
  %v1453 = vpack.c.b16 %v1068, %v1061
  %v1454 = vpack.c.b16 %v1069, %v1062
  %v1455 = vpack.c.b16 %v1070, %v1063
  %v1456 = vpack.c.b16 %v1071, %v1064
  %v1457 = vpack.c.b16 %v1079, %v1072
  %v1458 = vpack.c.b16 %v1080, %v1073
  %v1459 = vpack.c.b16 %v1081, %v1074
  %v1460 = vpack.c.b16 %v1082, %v1075
  %v1461 = vpack.c.b16 %v1083, %v1076
  %v1462 = vpack.c.b16 %v1084, %v1077
  %v1463 = vpack.c.b16 %v1085, %v1078
  %v1464 = vpack.c.b16 %v1093, %v1086
  %v1465 = vpack.c.b16 %v1094, %v1087
  %v1466 = vpack.c.b16 %v1095, %v1088
  %v1467 = vpack.c.b16 %v1096, %v1089
  %v1468 = vpack.c.b16 %v1097, %v1090
  %v1469 = vpack.c.b16 %v1098, %v1091
  %v1470 = vpack.c.b16 %v1099, %v1092
  %v1471 = vpack.c.b16 %v1107, %v1100
  %v1472 = vpack.c.b16 %v1108, %v1101
  %v1473 = vpack.c.b16 %v1109, %v1102
  %v1474 = vpack.c.b16 %v1110, %v1103
  %v1475 = vpack.c.b16 %v1111, %v1104
  %v1476 = vpack.c.b16 %v1112, %v1105
  %v1477 = vpack.c.b16 %v1113, %v1106
  %v1478 = vpack.c.b16 %v1121, %v1114
  %v1479 = vpack.c.b16 %v1122, %v1115
  %v1480 = vpack.c.b16 %v1123, %v1116
  %v1481 = vpack.c.b16 %v1124, %v1117
  %v1482 = vpack.c.b16 %v1125, %v1118
  %v1483 = vpack.c.b16 %v1126, %v1119
  %v1484 = vpack.c.b16 %v1127, %v1120
  %v1485 = vpack.c.b16 %v1135, %v1128
  %v1486 = vpack.c.b16 %v1136, %v1129
  %v1487 = vpack.c.b16 %v1137, %v1130
  %v1488 = vpack.c.b16 %v1138, %v1131
  %v1489 = vpack.c.b16 %v1139, %v1132
  %v1490 = vpack.c.b16 %v1140, %v1133
  %v1491 = vpack.c.b16 %v1141, %v1134
  %v1492 = vpack.c.b16 %v1149, %v1142
  %v1493 = vpack.c.b16 %v1150, %v1143
  %v1494 = vpack.c.b16 %v1151, %v1144
  %v1495 = vpack.c.b16 %v1152, %v1145
  %v1496 = vpack.c.b16 %v1153, %v1146
  %v1497 = vpack.c.b16 %v1154, %v1147
  %v1498 = vpack.c.b16 %v1155, %v1148
  %v1499 = vpack.c.b16 %v1163, %v1156
  %v1500 = vpack.c.b16 %v1164, %v1157
  %v1501 = vpack.c.b16 %v1165, %v1158
  %v1502 = vpack.c.b16 %v1166, %v1159
  %v1503 = vpack.c.b16 %v1167, %v1160
  %v1504 = vpack.c.b16 %v1168, %v1161
  %v1505 = vpack.c.b16 %v1169, %v1162
  %v1506 = vpack.c.b16 %v1177, %v1170
  %v1507 = vpack.c.b16 %v1178, %v1171
  %v1508 = vpack.c.b16 %v1179, %v1172
  %v1509 = vpack.c.b16 %v1180, %v1173
  %v1510 = vpack.c.b16 %v1181, %v1174
  %v1511 = vpack.c.b16 %v1182, %v1175
  %v1512 = vpack.c.b16 %v1183, %v1176
  %v1513 = vpack.c.b16 %v1191, %v1184
  %v1514 = vpack.c.b16 %v1192, %v1185
  %v1515 = vpack.c.b16 %v1193, %v1186
  %v1516 = vpack.c.b16 %v1194, %v1187
  %v1517 = vpack.c.b16 %v1195, %v1188
  %v1518 = vpack.c.b16 %v1196, %v1189
  %v1519 = vpack.c.b16 %v1197, %v1190
  %v1520 = vpack.c.b16 %v1205, %v1198
  %v1521 = vpack.c.b16 %v1206, %v1199
  %v1522 = vpack.c.b16 %v1207, %v1200
  %v1523 = vpack.c.b16 %v1208, %v1201
  %v1524 = vpack.c.b16 %v1209, %v1202
  %v1525 = vpack.c.b16 %v1210, %v1203
  %v1526 = vpack.c.b16 %v1211, %v1204
  %v1527 = vpack.c.b16 %v1219, %v1212
  %v1528 = vpack.c.b16 %v1220, %v1213
  %v1529 = vpack.c.b16 %v1221, %v1214
  %v1530 = vpack.c.b16 %v1222, %v1215
  %v1531 = vpack.c.b16 %v1223, %v1216
  %v1532 = vpack.c.b16 %v1224, %v1217
  %v1533 = vpack.c.b16 %v1225, %v1218
  %v1534 = vpack.c.b16 %v1233, %v1226
  %v1535 = vpack.c.b16 %v1234, %v1227
  %v1536 = vpack.c.b16 %v1235, %v1228
  %v1537 = vpack.c.b16 %v1236, %v1229
  %v1538 = vpack.c.b16 %v1237, %v1230
  %v1539 = vpack.c.b16 %v1238, %v1231
  %v1540 = vpack.c.b16 %v1239, %v1232
  %v1541 = vpack.c.b16 %v1247, %v1240
  %v1542 = vpack.c.b16 %v1248, %v1241
  %v1543 = vpack.c.b16 %v1249, %v1242
  %v1544 = vpack.c.b16 %v1250, %v1243
  %v1545 = vpack.c.b16 %v1251, %v1244
  %v1546 = vpack.c.b16 %v1252, %v1245
  %v1547 = vpack.c.b16 %v1253, %v1246
  %v1548 = vpack.c.b16 %v1261, %v1254
  %v1549 = vpack.c.b16 %v1262, %v1255
  %v1550 = vpack.c.b16 %v1263, %v1256
  %v1551 = vpack.c.b16 %v1264, %v1257
  %v1552 = vpack.c.b16 %v1265, %v1258
  %v1553 = vpack.c.b16 %v1266, %v1259
  %v1554 = vpack.c.b16 %v1267, %v1260
  %v1555 = vpack.c.b16 %v1275, %v1268
  %v1556 = vpack.c.b16 %v1276, %v1269
  %v1557 = vpack.c.b16 %v1277, %v1270
  %v1558 = vpack.c.b16 %v1278, %v1271
  %v1559 = vpack.c.b16 %v1279, %v1272
  %v1560 = vpack.c.b16 %v1280, %v1273
  %v1561 = vpack.c.b16 %v1281, %v1274
  %v1562 = vpack.c.b16 %v1289, %v1282
  %v1563 = vpack.c.b16 %v1290, %v1283
  %v1564 = vpack.c.b16 %v1291, %v1284
  %v1565 = vpack.c.b16 %v1292, %v1285
  %v1566 = vpack.c.b16 %v1293, %v1286
  %v1567 = vpack.c.b16 %v1294, %v1287
  %v1568 = vpack.c.b16 %v1295, %v1288
  %v1569 = vpack.c.b16 %v1303, %v1296
  %v1570 = vpack.c.b16 %v1304, %v1297
  %v1571 = vpack.c.b16 %v1305, %v1298
  %v1572 = vpack.c.b16 %v1306, %v1299
  %v1573 = vpack.c.b16 %v1307, %v1300
  %v1574 = vpack.c.b16 %v1308, %v1301
  %v1575 = vpack.c.b16 %v1309, %v1302
  %v1576 = vpack.c.b16 %v1317, %v1310
  %v1577 = vpack.c.b16 %v1318, %v1311
  %v1578 = vpack.c.b16 %v1319, %v1312
  %v1579 = vpack.c.b16 %v1320, %v1313
  %v1580 = vpack.c.b16 %v1321, %v1314
  %v1581 = vpack.c.b16 %v1322, %v1315
  %v1582 = vpack.c.b16 %v1323, %v1316
  %v1583 = vpack.c.b16 %v1331, %v1324
  %v1584 = vpack.c.b16 %v1332, %v1325
  %v1585 = vpack.c.b16 %v1333, %v1326
  %v1586 = vpack.c.b16 %v1334, %v1327
  %v1587 = vpack.c.b16 %v1335, %v1328
  %v1588 = vpack.c.b16 %v1336, %v1329
  %v1589 = vpack.c.b16 %v1337, %v1330
  %v1590 = vpack.c.b16 %v1345, %v1338
  %v1591 = vpack.c.b16 %v1346, %v1339
  %v1592 = vpack.c.b16 %v1347, %v1340
  %v1593 = vpack.c.b16 %v1348, %v1341
  %v1594 = vpack.c.b16 %v1349, %v1342
  %v1595 = vpack.c.b16 %v1350, %v1343
  %v1596 = vpack.c.b16 %v1351, %v1344
  %v1597 = vpack.c.b16 %v1359, %v1352
  %v1598 = vpack.c.b16 %v1360, %v1353
  %v1599 = vpack.c.b16 %v1361, %v1354
  %v1600 = vpack.c.b16 %v1362, %v1355
  %v1601 = vpack.c.b16 %v1363, %v1356
  %v1602 = vpack.c.b16 %v1364, %v1357
  %v1603 = vpack.c.b16 %v1365, %v1358
  %v1604 = vpack.c.b16 %v1373, %v1366
  %v1605 = vpack.c.b16 %v1374, %v1367
  %v1606 = vpack.c.b16 %v1375, %v1368
  %v1607 = vpack.c.b16 %v1376, %v1369
  %v1608 = vpack.c.b16 %v1377, %v1370
  %v1609 = vpack.c.b16 %v1378, %v1371
  %v1610 = vpack.c.b16 %v1379, %v1372
  %v1611 = vpack.c.b16 %v1387, %v1380
  %v1612 = vpack.c.b16 %v1388, %v1381
  %v1613 = vpack.c.b16 %v1389, %v1382
  %v1614 = vpack.c.b16 %v1390, %v1383
  %v1615 = vpack.c.b16 %v1391, %v1384
  %v1616 = vpack.c.b16 %v1392, %v1385
  %v1617 = vpack.c.b16 %v1393, %v1386
  %1842 = vmatprep.subr.bf16.mxu0 %v1444
  %1843 = vmatpush1.bf16.msra.mxu0 %v1443
  %1844 = vmatprep.subr.bf16.mxu0 %v1437
  %1845 = vmatpush1.bf16.msra.mxu0 %v1436
  %1846 = vmatprep.subr.bf16.mxu0 %v1430
  %1847 = vmatpush1.bf16.msra.mxu0 %v1429
  %1848 = vmatprep.subr.bf16.mxu0 %v1423
  %1849 = vmatpush1.bf16.msra.mxu0 %v1422
  %1850 = vmatprep.subr.bf16.mxu0 %v1416
  %1851 = vmatpush1.bf16.msra.mxu0 %v1415
  %1852 = vmatprep.subr.bf16.mxu0 %v1409
  %1853 = vmatpush1.bf16.msra.mxu0 %v1408
  %1854 = vmatprep.subr.bf16.mxu0 %v1402
  %1855 = vmatpush1.bf16.msra.mxu0 %v1401
  %1856 = vmatprep.subr.bf16.mxu0 %v1395
  %1857 = vmatpush1.bf16.msra.mxu0 %v1394
  %1858 = vmatprep.subr.bf16.mxu0 %v1500
  %1859 = vmatpush2.bf16.msra.mxu0 %v1499
  %1860 = vmatprep.subr.bf16.mxu0 %v1493
  %1861 = vmatpush2.bf16.msra.mxu0 %v1492
  %1862 = vmatprep.subr.bf16.mxu0 %v1486
  %1863 = vmatpush2.bf16.msra.mxu0 %v1485
  %1864 = vmatprep.subr.bf16.mxu0 %v1479
  %1865 = vmatpush2.bf16.msra.mxu0 %v1478
  %1866 = vmatprep.subr.bf16.mxu0 %v1472
  %1867 = vmatpush2.bf16.msra.mxu0 %v1471
  %1868 = vmatprep.subr.bf16.mxu0 %v1465
  %1869 = vmatpush2.bf16.msra.mxu0 %v1464
  %1870 = vmatprep.subr.bf16.mxu0 %v1458
  %1871 = vmatpush2.bf16.msra.mxu0 %v1457
  %1872 = vmatprep.subr.bf16.mxu0 %v1451
  %1873 = vmatpush2.bf16.msra.mxu0 %v1450
  %1874 = vmatprep.mubr.bf16.mxu0 %v394
  %1875 = vmatmul.mubr.bf16.gmra.mxu0 %v393
  %v1876 = vpop.f32.mrf.mxu0
  %v1877 = vadd.f32 %v658, %v1876
  %v1878 = vpop.f32.mrf.mxu0
  %v1879 = vadd.f32 %v662, %v1878
  %v1880 = vpop.f32.mrf.mxu0
  %v1881 = vadd.f32 %v658, %v1880
  %v1882 = vpop.f32.mrf.mxu0
  %v1883 = vadd.f32 %v662, %v1882
  %1884 = vdwg.mxu0
  %1885 = vmatprep.subr.bf16.mxu0 %v1556
  %1886 = vmatpush1.bf16.msra.mxu0 %v1555
  %1887 = vmatprep.subr.bf16.mxu0 %v1549
  %1888 = vmatpush1.bf16.msra.mxu0 %v1548
  %1889 = vmatprep.subr.bf16.mxu0 %v1542
  %1890 = vmatpush1.bf16.msra.mxu0 %v1541
  %1891 = vmatprep.subr.bf16.mxu0 %v1535
  %1892 = vmatpush1.bf16.msra.mxu0 %v1534
  %1893 = vmatprep.subr.bf16.mxu0 %v1528
  %1894 = vmatpush1.bf16.msra.mxu0 %v1527
  %1895 = vmatprep.subr.bf16.mxu0 %v1521
  %1896 = vmatpush1.bf16.msra.mxu0 %v1520
  %1897 = vmatprep.subr.bf16.mxu0 %v1514
  %1898 = vmatpush1.bf16.msra.mxu0 %v1513
  %1899 = vmatprep.subr.bf16.mxu0 %v1507
  %1900 = vmatpush1.bf16.msra.mxu0 %v1506
  %1901 = vmatprep.subr.bf16.mxu0 %v1612
  %1902 = vmatpush2.bf16.msra.mxu0 %v1611
  %1903 = vmatprep.subr.bf16.mxu0 %v1605
  %1904 = vmatpush2.bf16.msra.mxu0 %v1604
  %1905 = vmatprep.subr.bf16.mxu0 %v1598
  %1906 = vmatpush2.bf16.msra.mxu0 %v1597
  %1907 = vmatprep.subr.bf16.mxu0 %v1591
  %1908 = vmatpush2.bf16.msra.mxu0 %v1590
  %1909 = vmatprep.subr.bf16.mxu0 %v1584
  %1910 = vmatpush2.bf16.msra.mxu0 %v1583
  %1911 = vmatprep.subr.bf16.mxu0 %v1577
  %1912 = vmatpush2.bf16.msra.mxu0 %v1576
  %1913 = vmatprep.subr.bf16.mxu0 %v1570
  %1914 = vmatpush2.bf16.msra.mxu0 %v1569
  %1915 = vmatprep.subr.bf16.mxu0 %v1563
  %1916 = vmatpush2.bf16.msra.mxu0 %v1562
  %1917 = vmatprep.mubr.bf16.mxu0 %v396
  %1918 = vmatmul.mubr.bf16.gmra.mxu0 %v395
  %v1919 = vpop.f32.mrf.mxu0
  %v1920 = vadd.f32 %v1877, %v1919
  %v1921 = vpop.f32.mrf.mxu0
  %v1922 = vadd.f32 %v1879, %v1921
  %v1923 = vpop.f32.mrf.mxu0
  %v1924 = vadd.f32 %v1881, %v1923
  %v1925 = vpop.f32.mrf.mxu0
  %v1926 = vadd.f32 %v1883, %v1925
  %1927 = vdwg.mxu0
  %1928 = vmatprep.subr.bf16.mxu0 %v1446
  %1929 = vmatpush1.bf16.msra.mxu0 %v1445
  %1930 = vmatprep.subr.bf16.mxu0 %v1439
  %1931 = vmatpush1.bf16.msra.mxu0 %v1438
  %1932 = vmatprep.subr.bf16.mxu0 %v1432
  %1933 = vmatpush1.bf16.msra.mxu0 %v1431
  %1934 = vmatprep.subr.bf16.mxu0 %v1425
  %1935 = vmatpush1.bf16.msra.mxu0 %v1424
  %1936 = vmatprep.subr.bf16.mxu0 %v1418
  %1937 = vmatpush1.bf16.msra.mxu0 %v1417
  %1938 = vmatprep.subr.bf16.mxu0 %v1411
  %1939 = vmatpush1.bf16.msra.mxu0 %v1410
  %1940 = vmatprep.subr.bf16.mxu0 %v1404
  %1941 = vmatpush1.bf16.msra.mxu0 %v1403
  %1942 = vmatprep.subr.bf16.mxu0 %v1397
  %1943 = vmatpush1.bf16.msra.mxu0 %v1396
  %1944 = vmatprep.subr.bf16.mxu0 %v1502
  %1945 = vmatpush2.bf16.msra.mxu0 %v1501
  %1946 = vmatprep.subr.bf16.mxu0 %v1495
  %1947 = vmatpush2.bf16.msra.mxu0 %v1494
  %1948 = vmatprep.subr.bf16.mxu0 %v1488
  %1949 = vmatpush2.bf16.msra.mxu0 %v1487
  %1950 = vmatprep.subr.bf16.mxu0 %v1481
  %1951 = vmatpush2.bf16.msra.mxu0 %v1480
  %1952 = vmatprep.subr.bf16.mxu0 %v1474
  %1953 = vmatpush2.bf16.msra.mxu0 %v1473
  %1954 = vmatprep.subr.bf16.mxu0 %v1467
  %1955 = vmatpush2.bf16.msra.mxu0 %v1466
  %1956 = vmatprep.subr.bf16.mxu0 %v1460
  %1957 = vmatpush2.bf16.msra.mxu0 %v1459
  %1958 = vmatprep.subr.bf16.mxu0 %v1453
  %1959 = vmatpush2.bf16.msra.mxu0 %v1452
  %1960 = vmatprep.mubr.bf16.mxu0 %v394
  %1961 = vmatmul.mubr.bf16.gmra.mxu0 %v393
  %v1962 = vpop.f32.mrf.mxu0
  %v1963 = vadd.f32 %v666, %v1962
  %v1964 = vpop.f32.mrf.mxu0
  %v1965 = vadd.f32 %v670, %v1964
  %v1966 = vpop.f32.mrf.mxu0
  %v1967 = vadd.f32 %v666, %v1966
  %v1968 = vpop.f32.mrf.mxu0
  %v1969 = vadd.f32 %v670, %v1968
  %1970 = vdwg.mxu0
  %1971 = vmatprep.subr.bf16.mxu0 %v1558
  %1972 = vmatpush1.bf16.msra.mxu0 %v1557
  %1973 = vmatprep.subr.bf16.mxu0 %v1551
  %1974 = vmatpush1.bf16.msra.mxu0 %v1550
  %1975 = vmatprep.subr.bf16.mxu0 %v1544
  %1976 = vmatpush1.bf16.msra.mxu0 %v1543
  %1977 = vmatprep.subr.bf16.mxu0 %v1537
  %1978 = vmatpush1.bf16.msra.mxu0 %v1536
  %1979 = vmatprep.subr.bf16.mxu0 %v1530
  %1980 = vmatpush1.bf16.msra.mxu0 %v1529
  %1981 = vmatprep.subr.bf16.mxu0 %v1523
  %1982 = vmatpush1.bf16.msra.mxu0 %v1522
  %1983 = vmatprep.subr.bf16.mxu0 %v1516
  %1984 = vmatpush1.bf16.msra.mxu0 %v1515
  %1985 = vmatprep.subr.bf16.mxu0 %v1509
  %1986 = vmatpush1.bf16.msra.mxu0 %v1508
  %1987 = vmatprep.subr.bf16.mxu0 %v1614
  %1988 = vmatpush2.bf16.msra.mxu0 %v1613
  %1989 = vmatprep.subr.bf16.mxu0 %v1607
  %1990 = vmatpush2.bf16.msra.mxu0 %v1606
  %1991 = vmatprep.subr.bf16.mxu0 %v1600
  %1992 = vmatpush2.bf16.msra.mxu0 %v1599
  %1993 = vmatprep.subr.bf16.mxu0 %v1593
  %1994 = vmatpush2.bf16.msra.mxu0 %v1592
  %1995 = vmatprep.subr.bf16.mxu0 %v1586
  %1996 = vmatpush2.bf16.msra.mxu0 %v1585
  %1997 = vmatprep.subr.bf16.mxu0 %v1579
  %1998 = vmatpush2.bf16.msra.mxu0 %v1578
  %1999 = vmatprep.subr.bf16.mxu0 %v1572
  %2000 = vmatpush2.bf16.msra.mxu0 %v1571
  %2001 = vmatprep.subr.bf16.mxu0 %v1565
  %2002 = vmatpush2.bf16.msra.mxu0 %v1564
  %2003 = vmatprep.mubr.bf16.mxu0 %v396
  %2004 = vmatmul.mubr.bf16.gmra.mxu0 %v395
  %v2005 = vpop.f32.mrf.mxu0
  %v2006 = vadd.f32 %v1963, %v2005
  %v2007 = vpop.f32.mrf.mxu0
  %v2008 = vadd.f32 %v1965, %v2007
  %v2009 = vpop.f32.mrf.mxu0
  %v2010 = vadd.f32 %v1967, %v2009
  %v2011 = vpop.f32.mrf.mxu0
  %v2012 = vadd.f32 %v1969, %v2011
  %2013 = vdwg.mxu0
  %2014 = vmatprep.subr.bf16.mxu0 %v1448
  %2015 = vmatpush1.bf16.msra.mxu0 %v1447
  %2016 = vmatprep.subr.bf16.mxu0 %v1441
  %2017 = vmatpush1.bf16.msra.mxu0 %v1440
  %2018 = vmatprep.subr.bf16.mxu0 %v1434
  %2019 = vmatpush1.bf16.msra.mxu0 %v1433
  %2020 = vmatprep.subr.bf16.mxu0 %v1427
  %2021 = vmatpush1.bf16.msra.mxu0 %v1426
  %2022 = vmatprep.subr.bf16.mxu0 %v1420
  %2023 = vmatpush1.bf16.msra.mxu0 %v1419
  %2024 = vmatprep.subr.bf16.mxu0 %v1413
  %2025 = vmatpush1.bf16.msra.mxu0 %v1412
  %2026 = vmatprep.subr.bf16.mxu0 %v1406
  %2027 = vmatpush1.bf16.msra.mxu0 %v1405
  %2028 = vmatprep.subr.bf16.mxu0 %v1399
  %2029 = vmatpush1.bf16.msra.mxu0 %v1398
  %2030 = vmatprep.subr.bf16.mxu0 %v1504
  %2031 = vmatpush2.bf16.msra.mxu0 %v1503
  %2032 = vmatprep.subr.bf16.mxu0 %v1497
  %2033 = vmatpush2.bf16.msra.mxu0 %v1496
  %2034 = vmatprep.subr.bf16.mxu0 %v1490
  %2035 = vmatpush2.bf16.msra.mxu0 %v1489
  %2036 = vmatprep.subr.bf16.mxu0 %v1483
  %2037 = vmatpush2.bf16.msra.mxu0 %v1482
  %2038 = vmatprep.subr.bf16.mxu0 %v1476
  %2039 = vmatpush2.bf16.msra.mxu0 %v1475
  %2040 = vmatprep.subr.bf16.mxu0 %v1469
  %2041 = vmatpush2.bf16.msra.mxu0 %v1468
  %2042 = vmatprep.subr.bf16.mxu0 %v1462
  %2043 = vmatpush2.bf16.msra.mxu0 %v1461
  %2044 = vmatprep.subr.bf16.mxu0 %v1455
  %2045 = vmatpush2.bf16.msra.mxu0 %v1454
  %2046 = vmatprep.mubr.bf16.mxu0 %v394
  %2047 = vmatmul.mubr.bf16.gmra.mxu0 %v393
  %v2048 = vpop.f32.mrf.mxu0
  %v2049 = vadd.f32 %v674, %v2048
  %v2050 = vpop.f32.mrf.mxu0
  %v2051 = vadd.f32 %v678, %v2050
  %v2052 = vpop.f32.mrf.mxu0
  %v2053 = vadd.f32 %v674, %v2052
  %v2054 = vpop.f32.mrf.mxu0
  %v2055 = vadd.f32 %v678, %v2054
  %2056 = vdwg.mxu0
  %2057 = vmatprep.subr.bf16.mxu0 %v1560
  %2058 = vmatpush1.bf16.msra.mxu0 %v1559
  %2059 = vmatprep.subr.bf16.mxu0 %v1553
  %2060 = vmatpush1.bf16.msra.mxu0 %v1552
  %2061 = vmatprep.subr.bf16.mxu0 %v1546
  %2062 = vmatpush1.bf16.msra.mxu0 %v1545
  %2063 = vmatprep.subr.bf16.mxu0 %v1539
  %2064 = vmatpush1.bf16.msra.mxu0 %v1538
  %2065 = vmatprep.subr.bf16.mxu0 %v1532
  %2066 = vmatpush1.bf16.msra.mxu0 %v1531
  %2067 = vmatprep.subr.bf16.mxu0 %v1525
  %2068 = vmatpush1.bf16.msra.mxu0 %v1524
  %2069 = vmatprep.subr.bf16.mxu0 %v1518
  %2070 = vmatpush1.bf16.msra.mxu0 %v1517
  %2071 = vmatprep.subr.bf16.mxu0 %v1511
  %2072 = vmatpush1.bf16.msra.mxu0 %v1510
  %2073 = vmatprep.subr.bf16.mxu0 %v1616
  %2074 = vmatpush2.bf16.msra.mxu0 %v1615
  %2075 = vmatprep.subr.bf16.mxu0 %v1609
  %2076 = vmatpush2.bf16.msra.mxu0 %v1608
  %2077 = vmatprep.subr.bf16.mxu0 %v1602
  %2078 = vmatpush2.bf16.msra.mxu0 %v1601
  %2079 = vmatprep.subr.bf16.mxu0 %v1595
  %2080 = vmatpush2.bf16.msra.mxu0 %v1594
  %2081 = vmatprep.subr.bf16.mxu0 %v1588
  %2082 = vmatpush2.bf16.msra.mxu0 %v1587
  %2083 = vmatprep.subr.bf16.mxu0 %v1581
  %2084 = vmatpush2.bf16.msra.mxu0 %v1580
  %2085 = vmatprep.subr.bf16.mxu0 %v1574
  %2086 = vmatpush2.bf16.msra.mxu0 %v1573
  %2087 = vmatprep.subr.bf16.mxu0 %v1567
  %2088 = vmatpush2.bf16.msra.mxu0 %v1566
  %2089 = vmatprep.mubr.bf16.mxu0 %v396
  %2090 = vmatmul.mubr.bf16.gmra.mxu0 %v395
  %v2091 = vpop.f32.mrf.mxu0
  %v2092 = vadd.f32 %v2049, %v2091
  %v2093 = vpop.f32.mrf.mxu0
  %v2094 = vadd.f32 %v2051, %v2093
  %v2095 = vpop.f32.mrf.mxu0
  %v2096 = vadd.f32 %v2053, %v2095
  %v2097 = vpop.f32.mrf.mxu0
  %v2098 = vadd.f32 %v2055, %v2097
  %2099 = vdwg.mxu0
  %2100 = vmatprep.subr.bf16.mxu0 0
  %2101 = vmatpush1.bf16.msra.mxu0 %v1449
  %2102 = vmatprep.subr.bf16.mxu0 0
  %2103 = vmatpush1.bf16.msra.mxu0 %v1442
  %2104 = vmatprep.subr.bf16.mxu0 0
  %2105 = vmatpush1.bf16.msra.mxu0 %v1435
  %2106 = vmatprep.subr.bf16.mxu0 0
  %2107 = vmatpush1.bf16.msra.mxu0 %v1428
  %2108 = vmatprep.subr.bf16.mxu0 0
  %2109 = vmatpush1.bf16.msra.mxu0 %v1421
  %2110 = vmatprep.subr.bf16.mxu0 0
  %2111 = vmatpush1.bf16.msra.mxu0 %v1414
  %2112 = vmatprep.subr.bf16.mxu0 0
  %2113 = vmatpush1.bf16.msra.mxu0 %v1407
  %2114 = vmatprep.subr.bf16.mxu0 0
  %2115 = vmatpush1.bf16.msra.mxu0 %v1400
  %2116 = vmatprep.subr.bf16.mxu0 0
  %2117 = vmatpush2.bf16.msra.mxu0 %v1505
  %2118 = vmatprep.subr.bf16.mxu0 0
  %2119 = vmatpush2.bf16.msra.mxu0 %v1498
  %2120 = vmatprep.subr.bf16.mxu0 0
  %2121 = vmatpush2.bf16.msra.mxu0 %v1491
  %2122 = vmatprep.subr.bf16.mxu0 0
  %2123 = vmatpush2.bf16.msra.mxu0 %v1484
  %2124 = vmatprep.subr.bf16.mxu0 0
  %2125 = vmatpush2.bf16.msra.mxu0 %v1477
  %2126 = vmatprep.subr.bf16.mxu0 0
  %2127 = vmatpush2.bf16.msra.mxu0 %v1470
  %2128 = vmatprep.subr.bf16.mxu0 0
  %2129 = vmatpush2.bf16.msra.mxu0 %v1463
  %2130 = vmatprep.subr.bf16.mxu0 0
  %2131 = vmatpush2.bf16.msra.mxu0 %v1456
  %2132 = vmatprep.mubr.bf16.mxu0 %v394
  %2133 = vmatmul.mubr.bf16.gmra.mxu0 %v393
  %v2134 = vpop.f32.mrf.mxu0
  %v2135 = vadd.f32 %v682, %v2134
  %v2136 = vpop.f32.mrf.mxu0
  %v2137 = vpop.f32.mrf.mxu0
  %v2138 = vadd.f32 %v682, %v2137
  %v2139 = vpop.f32.mrf.mxu0
  %2140 = vdwg.mxu0
  %2141 = vmatprep.subr.bf16.mxu0 0
  %2142 = vmatpush1.bf16.msra.mxu0 %v1561
  %2143 = vmatprep.subr.bf16.mxu0 0
  %2144 = vmatpush1.bf16.msra.mxu0 %v1554
  %2145 = vmatprep.subr.bf16.mxu0 0
  %2146 = vmatpush1.bf16.msra.mxu0 %v1547
  %2147 = vmatprep.subr.bf16.mxu0 0
  %2148 = vmatpush1.bf16.msra.mxu0 %v1540
  %2149 = vmatprep.subr.bf16.mxu0 0
  %2150 = vmatpush1.bf16.msra.mxu0 %v1533
  %2151 = vmatprep.subr.bf16.mxu0 0
  %2152 = vmatpush1.bf16.msra.mxu0 %v1526
  %2153 = vmatprep.subr.bf16.mxu0 0
  %2154 = vmatpush1.bf16.msra.mxu0 %v1519
  %2155 = vmatprep.subr.bf16.mxu0 0
  %2156 = vmatpush1.bf16.msra.mxu0 %v1512
  %2157 = vmatprep.subr.bf16.mxu0 0
  %2158 = vmatpush2.bf16.msra.mxu0 %v1617
  %2159 = vmatprep.subr.bf16.mxu0 0
  %2160 = vmatpush2.bf16.msra.mxu0 %v1610
  %2161 = vmatprep.subr.bf16.mxu0 0
  %2162 = vmatpush2.bf16.msra.mxu0 %v1603
  %2163 = vmatprep.subr.bf16.mxu0 0
  %2164 = vmatpush2.bf16.msra.mxu0 %v1596
  %2165 = vmatprep.subr.bf16.mxu0 0
  %2166 = vmatpush2.bf16.msra.mxu0 %v1589
  %2167 = vmatprep.subr.bf16.mxu0 0
  %2168 = vmatpush2.bf16.msra.mxu0 %v1582
  %2169 = vmatprep.subr.bf16.mxu0 0
  %2170 = vmatpush2.bf16.msra.mxu0 %v1575
  %2171 = vmatprep.subr.bf16.mxu0 0
  %2172 = vmatpush2.bf16.msra.mxu0 %v1568
  %2173 = vmatprep.mubr.bf16.mxu0 %v396
  %2174 = vmatmul.mubr.bf16.gmra.mxu0 %v395
  %v2175 = vpop.f32.mrf.mxu0
  %v2176 = vadd.f32 %v2135, %v2175
  %v2177 = vpop.f32.mrf.mxu0
  %v2178 = vpop.f32.mrf.mxu0
  %v2179 = vadd.f32 %v2138, %v2178
  %v2180 = vpop.f32.mrf.mxu0
  %2181 = vdwg.mxu0
  %v2182 = vtanh.pop %v1920
  %v2183 = vtanh.pop %v1922
  %v2184 = vtanh.pop %v2006
  %v2185 = vtanh.pop %v2008
  %v2186 = vtanh.pop %v2092
  %v2187 = vtanh.pop %v2094
  %v2188 = vtanh.pop %v2176
  %v2189 = vtanh.pop %v1924
  %v2190 = vtanh.pop %v1926
  %v2191 = vtanh.pop %v2010
  %v2192 = vtanh.pop %v2012
  %v2193 = vtanh.pop %v2096
  %v2194 = vtanh.pop %v2098
  %v2195 = vtanh.pop %v2179
  %v2196 = vpack.c.bf16 %v2189, %v2182
  %v2197 = vpack.c.bf16 %v2190, %v2183
  %v2198 = vpack.c.bf16 %v2191, %v2184
  %v2199 = vpack.c.bf16 %v2192, %v2185
  %v2200 = vpack.c.bf16 %v2193, %v2186
  %v2201 = vpack.c.bf16 %v2194, %v2187
  %v2202 = vpack.c.bf16 %v2195, %v2188
  %v2210 = vunpack.c.l.b16 %v2196
  %v2211 = vunpack.c.l.b16 %v2197
  %v2212 = vunpack.c.l.b16 %v2198
  %v2213 = vunpack.c.l.b16 %v2199
  %v2214 = vunpack.c.l.b16 %v2200
  %v2215 = vunpack.c.l.b16 %v2201
  %v2216 = vunpack.c.l.b16 %v2202
  %v2217 = vunpack.c.h.b16 %v2196
  %v2218 = vunpack.c.h.b16 %v2197
  %v2219 = vunpack.c.h.b16 %v2198
  %v2220 = vunpack.c.h.b16 %v2199
  %v2221 = vunpack.c.h.b16 %v2200
  %v2222 = vunpack.c.h.b16 %v2201
  %v2223 = vunpack.c.h.b16 %v2202
  %v2224 = vpack.c.b16 %v2211, %v2210
  %v2225 = vpack.c.b16 %v2213, %v2212
  %v2226 = vpack.c.b16 %v2215, %v2214
  %v2227 = vpack.c.b16 %v2216, %v2216
  %v2228 = vpack.c.b16 %v2218, %v2217
  %v2229 = vpack.c.b16 %v2220, %v2219
  %v2230 = vpack.c.b16 %v2222, %v2221
  %v2231 = vpack.c.b16 %v2223, %v2223
  %2240 = vst [vmem:[%s5] sm:$0xff] %v2224
  %2241 = vst [vmem:[%s5 + $0x8] sm:$0xff] %v2225
  %2242 = vst [vmem:[%s5 + $0x10] sm:$0xff] %v2226
  %vm2243 = vcmask 125952
  %2244 = vst.msk [vmem:[%s5 + $0x18] sm:$0xf] %vm2243, %v2227
  %2245 = vst [vmem:[%s5 + $0x1c] sm:$0xff] %v2228
  %2246 = vst [vmem:[%s5 + $0x24] sm:$0xff] %v2229
  %2247 = vst [vmem:[%s5 + $0x2c] sm:$0xff] %v2230
  %2248 = vst.msk [vmem:[%s5 + $0x34] sm:$0xf] %vm2243, %v2231
  // Predicated region
  $region22: #{generator_forward.1} parent=0 // pred_check
    _
  $region23: #{generator_forward.1} parent=0 // pred_check_branch
    %2250 = sbr.rel (0) target = $region25
  $region24: #{generator_forward.1} parent=0 // pred_region
    _
  $region25: #{generator_forward.1} parent=0 // pred_fallthru
    _
  // Predicated region
  $region26: #{generator_forward.1} parent=0 // pred_check
    _
  $region27: #{generator_forward.1} parent=0 // pred_check_branch
    %2252 = sbr.rel (0) target = $region29
  $region28: #{generator_forward.1} parent=0 // pred_region
    _
  $region29: #{generator_forward.1} parent=0 // pred_fallthru
    _

</llo_original>
